<compile_context>
chip_gen: v7x
topology: tpu7x:2x2x1
jax: 0.10.0
libtpu: 0.0.40
codegen_flags: <defaults>
</compile_context>

<pallas_src>
import functools

import jax
import jax.numpy as jnp
import numpy as np
from jax.experimental import pallas as pl
from jax.experimental.pallas import tpu as pltpu


def _round_up(a, b):
    return ((a + b - 1) // b) * b


def _odconv_kernel(xpad_ref, w_ref, o_ref, *, K, C1p, KKC, tap_loop):
    # xpad_ref: (1, Hp, Wp, C1p)   bf16  padded NHWC input of sample n (resident across h tiles)
    # w_ref   : (1, KKC, C2p)      bf16  per-sample fully-folded weight, rows ordered (kh, kw, c1)
    # o_ref   : (1, TH, Wout, C2p) bf16  output row tile
    TH = o_ref.shape[1]
    Wout = o_ref.shape[2]
    C2p = o_ref.shape[3]

    h0 = pl.multiple_of(pl.program_id(1) * TH, TH)

    if tap_loop:
        # Large C1: no im2col materialization — accumulate K*K matmuls in f32 registers.
        acc = jnp.zeros((TH * Wout, C2p), jnp.float32)
        for kh in range(K):
            slab = xpad_ref[0, pl.ds(h0 + kh, TH), :, :]              # (TH, Wp, C1p)
            for kw in range(K):
                tap = slab[:, kw:kw + Wout, :].reshape(TH * Wout, C1p)
                r0 = (kh * K + kw) * C1p                              # static, sublane-aligned
                w_tap = w_ref[0, r0:r0 + C1p, :]                      # (C1p, C2p)
                acc = acc + jnp.dot(tap, w_tap,
                                    preferred_element_type=jnp.float32)
    else:
        # Small C1: single big-K MXU matmul over a zero-padded (multiple-of-128) contraction.
        cols = []
        for kh in range(K):
            slab = xpad_ref[0, pl.ds(h0 + kh, TH), :, :]              # (TH, Wp, C1p)
            for kw in range(K):
                cols.append(slab[:, kw:kw + Wout, :].reshape(TH * Wout, C1p))
        if KKC > K * K * C1p:
            cols.append(jnp.zeros((TH * Wout, KKC - K * K * C1p), jnp.bfloat16))
        patch = jnp.concatenate(cols, axis=-1)                        # (TH*Wout, KKC) bf16
        acc = jnp.dot(patch, w_ref[0], preferred_element_type=jnp.float32)

    o_ref[0] = acc.reshape(TH, Wout, C2p).astype(o_ref.dtype)


def _attention(x, p, *, kernel_size, temperature=1.0, eps=1e-5):
    """Attention head of ODConv2d (plain-JAX glue; O(N*C)-sized tensors)."""
    N = x.shape[0]
    pooled = jnp.mean(x, axis=(2, 3))                                           # (N, C1)
    z = pooled @ p['fc_w'].T                                                    # (N, A)
    z = (z - p['bn_m']) * (p['bn_g'] / jnp.sqrt(p['bn_v'] + eps)) + p['bn_b']   # BN (eval)
    z = jax.nn.relu(z)
    c_attn = jax.nn.sigmoid((z @ p['ch_w'].T + p['ch_b']) / temperature)        # (N, C1)
    f_attn = jax.nn.sigmoid((z @ p['fl_w'].T + p['fl_b']) / temperature)        # (N, C2)
    s_attn = jax.nn.sigmoid((z @ p['sp_w'].T + p['sp_b']) / temperature)
    s_attn = s_attn.reshape(N, kernel_size, kernel_size)                        # (N, K, K)
    k_attn = jax.nn.softmax((z @ p['kn_w'].T + p['kn_b']) / temperature, axis=1)  # (N, Knum)
    return c_attn, f_attn, s_attn, k_attn


def odconv2d_forward(x, params, *, kernel_size=3, padding=1, temperature=1.0, eps=1e-5):
    """ODConv2d forward (stride=1, dilation=1, groups=1). x: (N, C1, H, W) float32 NCHW."""
    N, C1, H, W = x.shape
    Knum, C2, _, K, _ = params['weight'].shape
    assert K == kernel_size

    c_attn, f_attn, s_attn, k_attn = _attention(
        x, params, kernel_size=K, temperature=temperature, eps=eps)

    # ---- fold all four attention factors into one per-sample weight, built DIRECTLY in
    #      im2col (kh, kw, c1, c2) order (no post-hoc transpose over the big weight) ----
    agg = jnp.einsum('nk,koihw->nhwio', k_attn, params['weight'])   # (N, K, K, C1, C2)
    agg = agg * s_attn[:, :, :, None, None]                          # spatial (per-tap)
    agg = agg * c_attn[:, None, None, :, None]                       # input-channel
    agg = agg * f_attn[:, None, None, None, :]                       # output-channel

    # ---- padding / layout choices ----
    C2p = _round_up(C2, 128)            # lane-dense output / full MXU columns
    C1p = _round_up(C1, 8)              # aligned tap pieces / sublane-aligned weight rows
    tap_loop = C1p >= 128               # large C1: skip im2col, accumulate tap matmuls
    if tap_loop:
        KKC = K * K * C1p
    else:
        KKC = _round_up(K * K * C1p, 128)   # fill MXU contraction for the big-K path

    agg = jnp.pad(agg, ((0, 0), (0, 0), (0, 0), (0, C1p - C1), (0, C2p - C2)))
    w_flat = agg.reshape(N, K * K * C1p, C2p)
    if KKC > K * K * C1p:
        w_flat = jnp.pad(w_flat, ((0, 0), (0, KKC - K * K * C1p), (0, 0)))
    w_flat = w_flat.astype(jnp.bfloat16)

    # ---- spatial tiling (TH multiple of 8 in [8, 32]; pad Hout up to a multiple of TH) ----
    Hout = H + 2 * padding - K + 1
    Wout = W + 2 * padding - K + 1
    TH = min(32, _round_up(Hout, 8))
    Hout_pad = _round_up(Hout, TH)
    extra_h = Hout_pad - Hout

    # NCHW -> NHWC, spatial pad (+ tail rows), channel pad, bf16 cast (fused by XLA under jit)
    xpad = jnp.pad(jnp.transpose(x, (0, 2, 3, 1)),
                   ((0, 0), (padding, padding + extra_h),
                    (padding, padding), (0, C1p - C1))).astype(jnp.bfloat16)
    Hp, Wp = H + 2 * padding + extra_h, W + 2 * padding

    # ---- VMEM budget: 2x image + 2x weight + 2x out tile + patch + acc, clamped to chip ----
    xpad_b = Hp * Wp * C1p * 2
    w_b = KKC * C2p * 2
    otile_b = TH * Wout * C2p * 2
    patch_b = 0 if tap_loop else TH * Wout * KKC * 2
    acc_b = TH * Wout * C2p * 4
    needed = 2 * xpad_b + 2 * w_b + 2 * otile_b + patch_b + acc_b
    try:
        vmem_cap = int(pltpu.get_tpu_info().vmem_capacity_bytes)
    except Exception:
        vmem_cap = 64 << 20                     # conservative (v7x per-TC VMEM)
    vmem_limit = int(min(max(2 * needed + (4 << 20), 32 << 20), int(0.9 * vmem_cap)))

    cost = pl.CostEstimate(
        flops=2 * N * Hout_pad * Wout * KKC * C2p,
        transcendentals=0,
        bytes_accessed=(N * Hp * Wp * C1p + N * KKC * C2p
                        + N * Hout_pad * Wout * C2p) * 2)

    out = pl.pallas_call(
        functools.partial(_odconv_kernel, K=K, C1p=C1p, KKC=KKC, tap_loop=tap_loop),
        out_shape=jax.ShapeDtypeStruct((N, Hout_pad, Wout, C2p), jnp.bfloat16),
        grid=(N, Hout_pad // TH),
        in_specs=[
            pl.BlockSpec((1, Hp, Wp, C1p), lambda n, h: (n, 0, 0, 0)),   # resident across h
            pl.BlockSpec((1, KKC, C2p), lambda n, h: (n, 0, 0)),         # resident across h
        ],
        out_specs=pl.BlockSpec((1, TH, Wout, C2p), lambda n, h: (n, h, 0, 0)),
        compiler_params=pltpu.CompilerParams(
            dimension_semantics=("parallel", "parallel"),
            vmem_limit_bytes=vmem_limit),
        cost_estimate=cost,
    )(xpad, w_flat)

    # drop pad rows / channels, back to PyTorch NCHW, f32
    out = out[:, :Hout, :, :C2].astype(jnp.float32)
    return jnp.transpose(out, (0, 3, 1, 2))


def _reference_forward(x, params, *, kernel_size, stride=1, padding=0,
                       temperature=1.0, eps=1e-5):
    """Pure-JAX reference mirroring the PyTorch ODConv2d structure (f32, lax.conv)."""
    c_attn, f_attn, s_attn, k_attn = _attention(
        x, params, kernel_size=kernel_size, temperature=temperature, eps=eps)
    w = params['weight']                                             # (Knum, C2, C1, K, K)
    agg = jnp.einsum('nk,koihw->noihw', k_attn, w) * s_attn[:, None, None, :, :]
    xs = x * c_attn[:, :, None, None]

    def conv_one(xi, wi):
        return jax.lax.conv_general_dilated(
            xi[None], wi, (stride, stride),
            ((padding, padding), (padding, padding)),
            dimension_numbers=('NCHW', 'OIHW', 'NCHW'))[0]

    y = jax.vmap(conv_one)(xs, agg)                                  # (N, C2, Hout, Wout)
    return y * f_attn[:, :, None, None]


if __name__ == "__main__":
    key = jax.random.PRNGKey(0)
    N, C1, C2, H, W = 2, 4, 8, 16, 16
    K, Knum, pad = 3, 4, 1
    A = max(int(C1 * 0.0625), 16)        # attention_channel (min_channel=16)

    ks = jax.random.split(key, 16)
    x = jax.random.normal(ks[0], (N, C1, H, W), dtype=jnp.float32)
    params = {
        'weight': jax.random.normal(ks[1], (Knum, C2, C1, K, K), jnp.float32) * 0.1,
        'fc_w':   jax.random.normal(ks[2], (A, C1), jnp.float32),
        'bn_g':   jax.random.uniform(ks[3], (A,), minval=0.5, maxval=1.5),
        'bn_b':   jax.random.normal(ks[4], (A,)) * 0.1,
        'bn_m':   jax.random.normal(ks[5], (A,)) * 0.05,
        'bn_v':   jax.random.uniform(ks[6], (A,), minval=0.5, maxval=1.5),
        'ch_w':   jax.random.normal(ks[7], (C1, A)) * 0.3,
        'ch_b':   jax.random.normal(ks[8], (C1,)) * 0.1,
        'fl_w':   jax.random.normal(ks[9], (C2, A)) * 0.3,
        'fl_b':   jax.random.normal(ks[10], (C2,)) * 0.1,
        'sp_w':   jax.random.normal(ks[11], (K * K, A)) * 0.3,
        'sp_b':   jax.random.normal(ks[12], (K * K,)) * 0.1,
        'kn_w':   jax.random.normal(ks[13], (Knum, A)) * 0.3,
        'kn_b':   jax.random.normal(ks[14], (Knum,)) * 0.1,
    }

    fwd = jax.jit(functools.partial(odconv2d_forward, kernel_size=K, padding=pad))
    out = jax.block_until_ready(fwd(x, params))

    ref = jax.block_until_ready(
        _reference_forward(x, params, kernel_size=K, padding=pad))
    np.testing.assert_allclose(np.asarray(out), np.asarray(ref), rtol=1e-2, atol=1e-2)

    print("KERNEL_OK")
</pallas_src>

<mosaic_0001>
module attributes {stable_mosaic.version = 11 : i64} {
  func.func @_odconv_kernel(%arg0: i32, %arg1: i32, %arg2: memref<1x18x18x8xbf16, #tpu.memory_space<vmem>>, %arg3: memref<1x128x128xbf16, #tpu.memory_space<vmem>>, %arg4: memref<1x16x16x128xbf16, #tpu.memory_space<vmem>>) attributes {dimension_semantics = [#tpu.dimension_semantics<parallel>, #tpu.dimension_semantics<parallel>], iteration_bounds = array<i64: 2, 1>, scalar_prefetch = 0 : i64, scratch_operands = 0 : i64, tpu.core_type = #tpu.core_type<tc>, window_params = [{transform_indices = @transform_0, window_bounds = array<i64: 1, 18, 18, 8>}, {transform_indices = @transform_1, window_bounds = array<i64: 1, 128, 128>}, {transform_indices = @transform_2, window_bounds = array<i64: 1, 16, 16, 128>}]} {
    %c16_i32 = arith.constant 16 : i32
    %0 = arith.muli %arg1, %c16_i32 : i32
    %1 = tpu.assume_multiple %0, 16 : i32
    %c0_i32 = arith.constant 0 : i32
    %2 = arith.addi %1, %c0_i32 : i32
    %c0 = arith.constant 0 : index
    %3 = arith.index_cast %2 : i32 to index
    %c0_0 = arith.constant 0 : index
    %c0_1 = arith.constant 0 : index
    %4 = vector.load %arg2[%c0, %3, %c0_0, %c0_1] : memref<1x18x18x8xbf16, #tpu.memory_space<vmem>>, vector<1x16x18x8xbf16>
    %5 = vector.shape_cast %4 : vector<1x16x18x8xbf16> to vector<16x18x8xbf16>
    %6 = vector.extract_strided_slice %5 {offsets = [0, 0, 0], sizes = [16, 16, 8], strides = [1, 1, 1]} : vector<16x18x8xbf16> to vector<16x16x8xbf16>
    %7 = vector.shape_cast %6 : vector<16x16x8xbf16> to vector<256x8xbf16>
    %8 = vector.extract_strided_slice %5 {offsets = [0, 1, 0], sizes = [16, 16, 8], strides = [1, 1, 1]} : vector<16x18x8xbf16> to vector<16x16x8xbf16>
    %9 = vector.shape_cast %8 : vector<16x16x8xbf16> to vector<256x8xbf16>
    %10 = vector.extract_strided_slice %5 {offsets = [0, 2, 0], sizes = [16, 16, 8], strides = [1, 1, 1]} : vector<16x18x8xbf16> to vector<16x16x8xbf16>
    %11 = vector.shape_cast %10 : vector<16x16x8xbf16> to vector<256x8xbf16>
    %c1_i32 = arith.constant 1 : i32
    %12 = arith.addi %1, %c1_i32 : i32
    %c0_2 = arith.constant 0 : index
    %13 = arith.index_cast %12 : i32 to index
    %c0_3 = arith.constant 0 : index
    %c0_4 = arith.constant 0 : index
    %14 = vector.load %arg2[%c0_2, %13, %c0_3, %c0_4] : memref<1x18x18x8xbf16, #tpu.memory_space<vmem>>, vector<1x16x18x8xbf16>
    %15 = vector.shape_cast %14 : vector<1x16x18x8xbf16> to vector<16x18x8xbf16>
    %16 = vector.extract_strided_slice %15 {offsets = [0, 0, 0], sizes = [16, 16, 8], strides = [1, 1, 1]} : vector<16x18x8xbf16> to vector<16x16x8xbf16>
    %17 = vector.shape_cast %16 : vector<16x16x8xbf16> to vector<256x8xbf16>
    %18 = vector.extract_strided_slice %15 {offsets = [0, 1, 0], sizes = [16, 16, 8], strides = [1, 1, 1]} : vector<16x18x8xbf16> to vector<16x16x8xbf16>
    %19 = vector.shape_cast %18 : vector<16x16x8xbf16> to vector<256x8xbf16>
    %20 = vector.extract_strided_slice %15 {offsets = [0, 2, 0], sizes = [16, 16, 8], strides = [1, 1, 1]} : vector<16x18x8xbf16> to vector<16x16x8xbf16>
    %21 = vector.shape_cast %20 : vector<16x16x8xbf16> to vector<256x8xbf16>
    %c2_i32 = arith.constant 2 : i32
    %22 = arith.addi %1, %c2_i32 : i32
    %c0_5 = arith.constant 0 : index
    %23 = arith.index_cast %22 : i32 to index
    %c0_6 = arith.constant 0 : index
    %c0_7 = arith.constant 0 : index
    %24 = vector.load %arg2[%c0_5, %23, %c0_6, %c0_7] : memref<1x18x18x8xbf16, #tpu.memory_space<vmem>>, vector<1x16x18x8xbf16>
    %25 = vector.shape_cast %24 : vector<1x16x18x8xbf16> to vector<16x18x8xbf16>
    %26 = vector.extract_strided_slice %25 {offsets = [0, 0, 0], sizes = [16, 16, 8], strides = [1, 1, 1]} : vector<16x18x8xbf16> to vector<16x16x8xbf16>
    %27 = vector.shape_cast %26 : vector<16x16x8xbf16> to vector<256x8xbf16>
    %28 = vector.extract_strided_slice %25 {offsets = [0, 1, 0], sizes = [16, 16, 8], strides = [1, 1, 1]} : vector<16x18x8xbf16> to vector<16x16x8xbf16>
    %29 = vector.shape_cast %28 : vector<16x16x8xbf16> to vector<256x8xbf16>
    %30 = vector.extract_strided_slice %25 {offsets = [0, 2, 0], sizes = [16, 16, 8], strides = [1, 1, 1]} : vector<16x18x8xbf16> to vector<16x16x8xbf16>
    %31 = vector.shape_cast %30 : vector<16x16x8xbf16> to vector<256x8xbf16>
    %cst = arith.constant 0.000000e+00 : bf16
    %32 = vector.broadcast %cst : bf16 to vector<256x56xbf16>
    %33 = tpu.concatenate %7, %9, %11, %17, %19, %21, %27, %29, %31, %32 in 1 : vector<256x8xbf16>, vector<256x8xbf16>, vector<256x8xbf16>, vector<256x8xbf16>, vector<256x8xbf16>, vector<256x8xbf16>, vector<256x8xbf16>, vector<256x8xbf16>, vector<256x8xbf16>, vector<256x56xbf16> -> vector<256x128xbf16>
    %c0_8 = arith.constant 0 : index
    %c0_9 = arith.constant 0 : index
    %c0_10 = arith.constant 0 : index
    %34 = vector.load %arg3[%c0_8, %c0_9, %c0_10] : memref<1x128x128xbf16, #tpu.memory_space<vmem>>, vector<1x128x128xbf16>
    %35 = vector.shape_cast %34 : vector<1x128x128xbf16> to vector<128x128xbf16>
    %cst_11 = arith.constant dense<0.000000e+00> : vector<256x128xf32>
    %36 = tpu.matmul %33, %35, %cst_11 {dimension_numbers = #tpu.dot_dimension_numbers<[1], [0], [0], [1], [0, 0, 1, 1], [], []>} : vector<256x128xbf16>, vector<128x128xbf16>, vector<256x128xf32> -> vector<256x128xf32>
    %37 = vector.shape_cast %36 : vector<256x128xf32> to vector<16x16x128xf32>
    %38 = arith.truncf %37 : vector<16x16x128xf32> to vector<16x16x128xbf16>
    %c0_12 = arith.constant 0 : index
    %c0_13 = arith.constant 0 : index
    %c0_14 = arith.constant 0 : index
    %c0_15 = arith.constant 0 : index
    %39 = vector.load %arg4[%c0_12, %c0_13, %c0_14, %c0_15] : memref<1x16x16x128xbf16, #tpu.memory_space<vmem>>, vector<1x16x16x128xbf16>
    %40 = vector.shape_cast %39 : vector<1x16x16x128xbf16> to vector<16x16x128xbf16>
    %41 = vector.shape_cast %38 : vector<16x16x128xbf16> to vector<1x16x16x128xbf16>
    tpu.vector_store %arg4[%c0_12, %c0_13, %c0_14, %c0_15], %41 {strides = array<i32>} : memref<1x16x16x128xbf16, #tpu.memory_space<vmem>>, vector<1x16x16x128xbf16>,
    return
  }
  func.func @transform_0(%arg0: i32, %arg1: i32) -> (i32, i32, i32, i32) {
    %c0_i32 = arith.constant 0 : i32
    %c0_i32_0 = arith.constant 0 : i32
    %c0_i32_1 = arith.constant 0 : i32
    %c0_i32_2 = arith.constant 0 : i32
    return %arg0, %c0_i32, %c0_i32_0, %c0_i32_1 : i32, i32, i32, i32
  }
  func.func @transform_1(%arg0: i32, %arg1: i32) -> (i32, i32, i32) {
    %c0_i32 = arith.constant 0 : i32
    %c0_i32_0 = arith.constant 0 : i32
    %c0_i32_1 = arith.constant 0 : i32
    return %arg0, %c0_i32, %c0_i32_0 : i32, i32, i32
  }
  func.func @transform_2(%arg0: i32, %arg1: i32) -> (i32, i32, i32, i32) {
    %c0_i32 = arith.constant 0 : i32
    %c0_i32_0 = arith.constant 0 : i32
    %c0_i32_1 = arith.constant 0 : i32
    return %arg0, %arg1, %c0_i32, %c0_i32_0 : i32, i32, i32, i32
  }
}

</mosaic_0001>

<llo_original>
// kernel: mul.21
$region0: #{mul.21}
  %s0 = inlined_call_operand.vmem [shape: f32[2,9], index: 0, kind: input, shape index: {}]
  %s1 = inlined_call_operand.vmem [shape: f32[2,3,3], index: 1, kind: output, shape index: {}]
  $region1: #{mul.21} parent=0
    #allocation0 [shape = 'u8[8192]{0}', space=vmem, size = 0x2000, scoped, tag = 'scoped mem for output reshape']
    #allocation1 [shape = 'u8[4096]{0}', space=vmem, size = 0x1000, scoped, tag = 'scoped mem for input reshape']
    %s3 = sshllo.u32 0, 2
    %v4 = vld [vmem:[%s0] sm:%s3]
    %5 = vst [vmem:[#allocation1] sm:%s3] %v4
    %v6 = vld [vmem:[#allocation1] sm:$0x3]
    %vm7 = vcmask 23552
    %8 = vst.msk [vmem:[#allocation0] ss:$8 sm:$0x3] %vm7, %v6
    %v9 = vld [vmem:[#allocation1] sm:$0x3]
    %10 = vrot.lane.b32.xlu0 %v9, 125
    %v11 = vpop.permute.xlu0 %10
    %vm12 = vcmask 23552
    %s13 = scalar_lea.vmem [#allocation0], 1
    %14 = vst.msk [vmem:[%s13] ss:$8 sm:$0x3] %vm12, %v11
    %v15 = vld [vmem:[#allocation1] sm:$0x3]
    %16 = vrot.lane.b32.xlu0 %v15, 122
    %v17 = vpop.permute.xlu0 %16
    %vm18 = vcmask 23552
    %s19 = scalar_lea.vmem [#allocation0], 2
    %20 = vst.msk [vmem:[%s19] ss:$8 sm:$0x3] %vm18, %v17
    %s22 = sshllo.u32 0, 4
    %v24 = vld [vmem:[#allocation0] sm:%s22]
    %s25 = sshllo.u32 0, 4
    %26 = vst [vmem:[%s1] sm:%s25] %v24
    %s27 = scalar_lea.vmem [#allocation0], 8
    %v28 = vld [vmem:[%s27] sm:%s22]
    %s29 = sshllo.u32 0, 4
    %s30 = scalar_lea.vmem %s1, 4
    %31 = vst [vmem:[%s30] sm:%s29] %v28

// kernel: odconv2d_forward.1
$region0: #{odconv2d_forward.1}
  #allocation0 [shape = 'u32[]', space=smem, size = 0x4, offset = 0x4, fixed_abs, tag = 'smem constant byte address 0x4 - core index']
  #allocation1 [shape = 'u32[144,128]{1,0:T(1,128)}', space=vmem, size = 0x12000, scoped, tag = 'internal scratch']
  %s0 = inlined_call_operand.vmem [shape: bf16[2,18,18,8], index: 0, kind: input, shape index: {}]
  %s1 = inlined_call_operand.vmem [shape: bf16[2,128,128], index: 1, kind: input, shape index: {}]
  %s2 = inlined_call_operand.vmem [shape: bf16[2,16,16,128], index: 2, kind: output, shape index: {}]
  %s3 = sld [smem:[#allocation0]]
  $region41: #{odconv2d_forward.1} parent=0
    _
  %s5 = ssub.s32 1, %s3
  %s6 = scalar_select 0, %s5, %s3
  loop: start=0, step=1, limit=4
  $region2: #{odconv2d_forward.1} parent=0 // loop_pre_header
    _
  $region3: #{odconv2d_forward.1} parent=0 // loop_header
    %s8 = sphi 0, %s12
    %p9 = scmp.ge.s32.totalorder %s8, 4
    %s15 = sphi 0, %s27
    %s16 = sphi 0, %s23
    %s17 = sphi 0, %s15
    %s18 = sphi 0, %s16
    %s19 = sphi 0, %s17
    %s20 = sphi 0, %s18
    %s30 = sphi 0, %s32
    %s33 = sphi 0, %s30
    %s34 = sphi 0, %s33
    %s50 = sphi 0, %s34
    %s56 = sphi 0, %s58
    %s59 = sphi 0, %s56
    %s60 = sphi 0, %s59
    %s76 = sphi 0, %s60
    %s84 = sphi 0, %s86
    %s87 = sphi 0, %s84
    %s88 = sphi 0, %s87
    %s104 = sphi 0, %s88
  $region4: #{odconv2d_forward.1} parent=0 // loop_header_branch
    %11 = sbr.rel (%p9) target = $region8
  $region5: #{odconv2d_forward.1} parent=0 // loop_body
    %s13 = ssub.s32 %s8, 1
    %s14 = ssub.s32 %s8, 2
    %s21 = sadd.s32 1, %s16
    %p22 = scmp.ge.s32.totalorder %s21, 1
    %s23 = scalar_select %p22, 0, %s21
    %s24 = sadd.s32 1, %s15
    %s25 = scalar_select %p22, %s24, %s15
    %p26 = scmp.ge.s32.totalorder %s25, 2
    %s27 = scalar_select %p26, 0, %s25
    %s28 = ssub.s32 %s15, %s27
    %p29 = scmp.eq.s32.totalorder %s28, 0
    %s31 = sadd.s32 %s30, 1
    %s32 = scalar_select %p29, %s30, %s31
    %p35 = pneg %p29
    %p36 = scmp.eq.s32.totalorder %s8, 1
    %p37 = por %p35, %p36
    %p38 = scmp.ne.s32.totalorder %s30, %s33
    %p39 = scmp.eq.s32.totalorder %s8, 0
    %p40 = por %p38, %p39
    %p41 = scmp.ne.s32.totalorder %s30, %s33
    %p42 = scmp.eq.s32.totalorder %s13, 1
    %p43 = por %p41, %p42
    %p44 = scmp.ne.s32.totalorder %s33, %s34
    %p45 = scmp.eq.s32.totalorder %s13, 0
    %p46 = por %p44, %p45
    %p47 = scmp.ne.s32.totalorder %s33, %s34
    %p48 = scmp.eq.s32.totalorder %s14, 1
    %p49 = por %p47, %p48
    %p51 = scmp.ne.s32.totalorder %s34, %s50
    %p52 = scmp.eq.s32.totalorder %s14, 0
    %p53 = por %p51, %p52
    %s54 = ssub.s32 %s15, %s27
    %p55 = scmp.eq.s32.totalorder %s54, 0
    %s57 = sadd.s32 %s56, 1
    %s58 = scalar_select %p55, %s56, %s57
    %p61 = pneg %p55
    %p62 = scmp.eq.s32.totalorder %s8, 1
    %p63 = por %p61, %p62
    %p64 = scmp.ne.s32.totalorder %s56, %s59
    %p65 = scmp.eq.s32.totalorder %s8, 0
    %p66 = por %p64, %p65
    %p67 = scmp.ne.s32.totalorder %s56, %s59
    %p68 = scmp.eq.s32.totalorder %s13, 1
    %p69 = por %p67, %p68
    %p70 = scmp.ne.s32.totalorder %s59, %s60
    %p71 = scmp.eq.s32.totalorder %s13, 0
    %p72 = por %p70, %p71
    %p73 = scmp.ne.s32.totalorder %s59, %s60
    %p74 = scmp.eq.s32.totalorder %s14, 1
    %p75 = por %p73, %p74
    %p77 = scmp.ne.s32.totalorder %s60, %s76
    %p78 = scmp.eq.s32.totalorder %s14, 0
    %p79 = por %p77, %p78
    %s80 = ssub.s32 %s15, %s27
    %s81 = ssub.s32 %s16, %s23
    %s82 = sor.u32 %s80, %s81
    %p83 = scmp.eq.s32.totalorder %s82, 0
    %s85 = sadd.s32 %s84, 1
    %s86 = scalar_select %p83, %s84, %s85
    %p89 = pneg %p83
    %p90 = scmp.eq.s32.totalorder %s8, 1
    %p91 = por %p89, %p90
    %p92 = scmp.ne.s32.totalorder %s84, %s87
    %p93 = scmp.eq.s32.totalorder %s8, 0
    %p94 = por %p92, %p93
    %p95 = scmp.ne.s32.totalorder %s84, %s87
    %p96 = scmp.eq.s32.totalorder %s13, 1
    %p97 = por %p95, %p96
    %p98 = scmp.ne.s32.totalorder %s87, %s88
    %p99 = scmp.eq.s32.totalorder %s13, 0
    %p100 = por %p98, %p99
    %p101 = scmp.ne.s32.totalorder %s87, %s88
    %p102 = scmp.eq.s32.totalorder %s14, 1
    %p103 = por %p101, %p102
    %p105 = scmp.ne.s32.totalorder %s88, %s104
    %p106 = scmp.eq.s32.totalorder %s14, 0
    %p107 = por %p105, %p106
    %p108 = scmp.le.s32.totalorder 1, %s8
    %p109 = scmp.lt.s32.totalorder %s8, 3
    %p110 = pnand %p108, %p109
    %p111 = pneg %p110
    // Predicated region
    $region9: #{odconv2d_forward.1} parent=5 // pred_check
      _
    $region10: #{odconv2d_forward.1} parent=5 // pred_check_branch
      %113 = sbr.rel (%p110) target = $region12
    $region11: #{odconv2d_forward.1} parent=5 // pred_region
      %s114 = ssub.s32 %s8, 1
    $region12: #{odconv2d_forward.1} parent=5 // pred_fallthru
      _
    %p115 = scmp.lt.s32.totalorder %s8, 2
    // Predicated region
    $region13: #{odconv2d_forward.1} parent=5 // pred_check
      %p116 = pneg %p115
    $region14: #{odconv2d_forward.1} parent=5 // pred_check_branch
      %118 = sbr.rel (%p116) target = $region16
    $region15: #{odconv2d_forward.1} parent=5 // pred_region
      // Predicated region
      $region17: #{odconv2d_forward.1} parent=15 // pred_check
        %p119 = pneg %p40
      $region18: #{odconv2d_forward.1} parent=15 // pred_check_branch
        %121 = sbr.rel (%p119) target = $region20
      $region19: #{odconv2d_forward.1} parent=15 // pred_region
        %p122 = scmp.lt.s32.totalorder %s15, 1
        %s123 = scalar_select %p122, %s15, 1
        %s124 = smul.addr %s123, 54
        %s125 = smul.addr %s124, 4
        %s126 = scalar_lea.vmem %s0, %s125
      $region20: #{odconv2d_forward.1} parent=15 // pred_fallthru
        _
      // Predicated region
      $region21: #{odconv2d_forward.1} parent=15 // pred_check
        %p127 = pneg %p66
      $region22: #{odconv2d_forward.1} parent=15 // pred_check_branch
        %129 = sbr.rel (%p127) target = $region24
      $region23: #{odconv2d_forward.1} parent=15 // pred_region
        %p130 = scmp.lt.s32.totalorder %s15, 1
        %s131 = scalar_select %p130, %s15, 1
        %s132 = smul.addr %s131, 16
        %s133 = smul.addr %s132, 4
        %s134 = scalar_lea.vmem %s1, %s133
      $region24: #{odconv2d_forward.1} parent=15 // pred_fallthru
        _
    $region16: #{odconv2d_forward.1} parent=5 // pred_fallthru
      _
    %p135 = scmp.le.s32.totalorder 1, %s8
    %p136 = scmp.lt.s32.totalorder %s8, 3
    %p137 = pnand %p135, %p136
    %p138 = pneg %p137
    // Predicated region
    $region25: #{odconv2d_forward.1} parent=5 // pred_check
      _
    $region26: #{odconv2d_forward.1} parent=5 // pred_check_branch
      %140 = sbr.rel (%p137) target = $region28
    $region27: #{odconv2d_forward.1} parent=5 // pred_region
      %s141 = ssub.s32 %s8, 1
      %p142 = scmp.lt.s32.totalorder %s17, 1
      %s143 = scalar_select %p142, %s17, 1
      %s144 = smul.addr %s143, 54
      %s145 = smul.addr %s144, 4
      %s146 = scalar_lea.vmem %s0, %s145
      %p147 = pneg %p46
      %p148 = pneg %p43
      %p149 = scmp.lt.s32.totalorder %s17, 1
      %s150 = scalar_select %p149, %s17, 1
      %s151 = smul.addr %s150, 16
      %s152 = smul.addr %s151, 4
      %s153 = scalar_lea.vmem %s1, %s152
      %p154 = pneg %p72
      %p155 = pneg %p69
      %p156 = pneg %p100
      %p157 = pneg %p97
      %s158 = smul.u32 16, %s18
      %p159 = scmp.lt.s32.totalorder %s17, 1
      %s160 = scalar_select %p159, %s17, 1
      %p161 = scmp.lt.s32.totalorder %s158, 15
      %s162 = scalar_select %p161, %s158, 15
      %s163 = smul.addr %s162, 2
      %s164 = smul.addr %s160, 32
      %s165 = sadd.s32 %s163, %s164
      %s166 = smul.addr %s165, 4
      %s167 = scalar_lea.vmem %s2, %s166
      %p168 = scmp.lt.s32.totalorder %s17, 1
      %s169 = scalar_select %p168, %s17, 1
      %s170 = smul.addr %s169, 54
      %s171 = smul.addr %s170, 4
      %s172 = scalar_lea.vmem %s0, %s171
      %p173 = scmp.lt.s32.totalorder %s17, 1
      %s174 = scalar_select %p173, %s17, 1
      %s175 = smul.addr %s174, 16
      %s176 = smul.addr %s175, 4
      %s177 = scalar_lea.vmem %s1, %s176
      %s178 = smul.u32 16, %s18
      %p179 = scmp.lt.s32.totalorder %s17, 1
      %s180 = scalar_select %p179, %s17, 1
      %p181 = scmp.lt.s32.totalorder %s178, 15
      %s182 = scalar_select %p181, %s178, 15
      %s183 = smul.addr %s182, 2
      %s184 = smul.addr %s180, 32
      %s185 = sadd.s32 %s183, %s184
      %s186 = smul.addr %s185, 4
      %s187 = scalar_lea.vmem %s2, %s186
      %s188 = smul.u32 16, %s18
      %s190 = smul.u32 %s18, 16
      %s191 = smul.u32 %s190, 3
      %s192 = smul.addr %s191, 4
      %s193 = scalar_lea.vmem %s172, %s192
      %v194 = vld [vmem:[%s193] sm:$0xf]
      %v195 = vld [vmem:[%s193 + $0x4] sm:$0xf]
      %v196 = vld [vmem:[%s193 + $0x8] sm:$0x1]
      %v197 = vld [vmem:[%s193 + $0xc] sm:$0xf]
      %v198 = vld [vmem:[%s193 + $0x10] sm:$0xf]
      %v199 = vld [vmem:[%s193 + $0x14] sm:$0x1]
      %v200 = vld [vmem:[%s193 + $0x18] sm:$0xf]
      %v201 = vld [vmem:[%s193 + $0x1c] sm:$0xf]
      %v202 = vld [vmem:[%s193 + $0x20] sm:$0x1]
      %v203 = vld [vmem:[%s193 + $0x24] sm:$0xf]
      %v204 = vld [vmem:[%s193 + $0x28] sm:$0xf]
      %v205 = vld [vmem:[%s193 + $0x2c] sm:$0x1]
      %v206 = vld [vmem:[%s193 + $0x30] sm:$0xf]
      %v207 = vld [vmem:[%s193 + $0x34] sm:$0xf]
      %v208 = vld [vmem:[%s193 + $0x38] sm:$0x1]
      %v209 = vld [vmem:[%s193 + $0x3c] sm:$0xf]
      %v210 = vld [vmem:[%s193 + $0x40] sm:$0xf]
      %v211 = vld [vmem:[%s193 + $0x44] sm:$0x1]
      %v212 = vld [vmem:[%s193 + $0x48] sm:$0xf]
      %v213 = vld [vmem:[%s193 + $0x4c] sm:$0xf]
      %v214 = vld [vmem:[%s193 + $0x50] sm:$0x1]
      %v215 = vld [vmem:[%s193 + $0x54] sm:$0xf]
      %v216 = vld [vmem:[%s193 + $0x58] sm:$0xf]
      %v217 = vld [vmem:[%s193 + $0x5c] sm:$0x1]
      %v218 = vld [vmem:[%s193 + $0x60] sm:$0xf]
      %v219 = vld [vmem:[%s193 + $0x64] sm:$0xf]
      %v220 = vld [vmem:[%s193 + $0x68] sm:$0x1]
      %v221 = vld [vmem:[%s193 + $0x6c] sm:$0xf]
      %v222 = vld [vmem:[%s193 + $0x70] sm:$0xf]
      %v223 = vld [vmem:[%s193 + $0x74] sm:$0x1]
      %v224 = vld [vmem:[%s193 + $0x78] sm:$0xf]
      %v225 = vld [vmem:[%s193 + $0x7c] sm:$0xf]
      %v226 = vld [vmem:[%s193 + $0x80] sm:$0x1]
      %v227 = vld [vmem:[%s193 + $0x84] sm:$0xf]
      %v228 = vld [vmem:[%s193 + $0x88] sm:$0xf]
      %v229 = vld [vmem:[%s193 + $0x8c] sm:$0x1]
      %v230 = vld [vmem:[%s193 + $0x90] sm:$0xf]
      %v231 = vld [vmem:[%s193 + $0x94] sm:$0xf]
      %v232 = vld [vmem:[%s193 + $0x98] sm:$0x1]
      %v233 = vld [vmem:[%s193 + $0x9c] sm:$0xf]
      %v234 = vld [vmem:[%s193 + $0xa0] sm:$0xf]
      %v235 = vld [vmem:[%s193 + $0xa4] sm:$0x1]
      %v236 = vld [vmem:[%s193 + $0xa8] sm:$0xf]
      %v237 = vld [vmem:[%s193 + $0xac] sm:$0xf]
      %v238 = vld [vmem:[%s193 + $0xb0] sm:$0x1]
      %v239 = vld [vmem:[%s193 + $0xb4] sm:$0xf]
      %v240 = vld [vmem:[%s193 + $0xb8] sm:$0xf]
      %v241 = vld [vmem:[%s193 + $0xbc] sm:$0x1]
      %vm242 = vsmask.f32 3328
      %vm243 = vsmask.f32 7440
      %vm244 = vmor %vm242, %vm243
      %v246 = vshrl.u32 %v194, 16
      %v248 = vrot.slane %v246, 4
      %v249 = vshll.u32 %v194, 16
      %v251 = vrot.slane %v249, 5
      %v252 = vor.u32 %v248, %v251
      %v253 = vrot.slane %v252, 4
      %v255 = vshll.u32 %v195, 16
      %v257 = vrot.slane %v255, 5
      %v258 = vsel %vm244, %v253, %v257
      %v259 = vshrl.u32 %v195, 16
      %v261 = vrot.slane %v259, 4
      %v262 = vor.u32 %v261, %v257
      %v263 = vrot.slane %v262, 4
      %v265 = vshll.u32 %v196, 16
      %v267 = vrot.slane %v265, 5
      %v268 = vsel %vm244, %v263, %v267
      %v270 = vshrl.u32 %v197, 16
      %v272 = vrot.slane %v270, 4
      %v273 = vshll.u32 %v197, 16
      %v275 = vrot.slane %v273, 5
      %v276 = vor.u32 %v272, %v275
      %v277 = vrot.slane %v276, 4
      %v279 = vshll.u32 %v198, 16
      %v281 = vrot.slane %v279, 5
      %v282 = vsel %vm244, %v277, %v281
      %v283 = vshrl.u32 %v198, 16
      %v285 = vrot.slane %v283, 4
      %v286 = vor.u32 %v285, %v281
      %v287 = vrot.slane %v286, 4
      %v289 = vshll.u32 %v199, 16
      %v291 = vrot.slane %v289, 5
      %v292 = vsel %vm244, %v287, %v291
      %v294 = vshrl.u32 %v200, 16
      %v296 = vrot.slane %v294, 4
      %v297 = vshll.u32 %v200, 16
      %v299 = vrot.slane %v297, 5
      %v300 = vor.u32 %v296, %v299
      %v301 = vrot.slane %v300, 4
      %v303 = vshll.u32 %v201, 16
      %v305 = vrot.slane %v303, 5
      %v306 = vsel %vm244, %v301, %v305
      %v307 = vshrl.u32 %v201, 16
      %v309 = vrot.slane %v307, 4
      %v310 = vor.u32 %v309, %v305
      %v311 = vrot.slane %v310, 4
      %v313 = vshll.u32 %v202, 16
      %v315 = vrot.slane %v313, 5
      %v316 = vsel %vm244, %v311, %v315
      %v318 = vshrl.u32 %v203, 16
      %v320 = vrot.slane %v318, 4
      %v321 = vshll.u32 %v203, 16
      %v323 = vrot.slane %v321, 5
      %v324 = vor.u32 %v320, %v323
      %v325 = vrot.slane %v324, 4
      %v327 = vshll.u32 %v204, 16
      %v329 = vrot.slane %v327, 5
      %v330 = vsel %vm244, %v325, %v329
      %v331 = vshrl.u32 %v204, 16
      %v333 = vrot.slane %v331, 4
      %v334 = vor.u32 %v333, %v329
      %v335 = vrot.slane %v334, 4
      %v337 = vshll.u32 %v205, 16
      %v339 = vrot.slane %v337, 5
      %v340 = vsel %vm244, %v335, %v339
      %v342 = vshrl.u32 %v206, 16
      %v344 = vrot.slane %v342, 4
      %v345 = vshll.u32 %v206, 16
      %v347 = vrot.slane %v345, 5
      %v348 = vor.u32 %v344, %v347
      %v349 = vrot.slane %v348, 4
      %v351 = vshll.u32 %v207, 16
      %v353 = vrot.slane %v351, 5
      %v354 = vsel %vm244, %v349, %v353
      %v355 = vshrl.u32 %v207, 16
      %v357 = vrot.slane %v355, 4
      %v358 = vor.u32 %v357, %v353
      %v359 = vrot.slane %v358, 4
      %v361 = vshll.u32 %v208, 16
      %v363 = vrot.slane %v361, 5
      %v364 = vsel %vm244, %v359, %v363
      %v366 = vshrl.u32 %v209, 16
      %v368 = vrot.slane %v366, 4
      %v369 = vshll.u32 %v209, 16
      %v371 = vrot.slane %v369, 5
      %v372 = vor.u32 %v368, %v371
      %v373 = vrot.slane %v372, 4
      %v375 = vshll.u32 %v210, 16
      %v377 = vrot.slane %v375, 5
      %v378 = vsel %vm244, %v373, %v377
      %v379 = vshrl.u32 %v210, 16
      %v381 = vrot.slane %v379, 4
      %v382 = vor.u32 %v381, %v377
      %v383 = vrot.slane %v382, 4
      %v385 = vshll.u32 %v211, 16
      %v387 = vrot.slane %v385, 5
      %v388 = vsel %vm244, %v383, %v387
      %v390 = vshrl.u32 %v212, 16
      %v392 = vrot.slane %v390, 4
      %v393 = vshll.u32 %v212, 16
      %v395 = vrot.slane %v393, 5
      %v396 = vor.u32 %v392, %v395
      %v397 = vrot.slane %v396, 4
      %v399 = vshll.u32 %v213, 16
      %v401 = vrot.slane %v399, 5
      %v402 = vsel %vm244, %v397, %v401
      %v403 = vshrl.u32 %v213, 16
      %v405 = vrot.slane %v403, 4
      %v406 = vor.u32 %v405, %v401
      %v407 = vrot.slane %v406, 4
      %v409 = vshll.u32 %v214, 16
      %v411 = vrot.slane %v409, 5
      %v412 = vsel %vm244, %v407, %v411
      %v414 = vshrl.u32 %v215, 16
      %v416 = vrot.slane %v414, 4
      %v417 = vshll.u32 %v215, 16
      %v419 = vrot.slane %v417, 5
      %v420 = vor.u32 %v416, %v419
      %v421 = vrot.slane %v420, 4
      %v423 = vshll.u32 %v216, 16
      %v425 = vrot.slane %v423, 5
      %v426 = vsel %vm244, %v421, %v425
      %v427 = vshrl.u32 %v216, 16
      %v429 = vrot.slane %v427, 4
      %v430 = vor.u32 %v429, %v425
      %v431 = vrot.slane %v430, 4
      %v433 = vshll.u32 %v217, 16
      %v435 = vrot.slane %v433, 5
      %v436 = vsel %vm244, %v431, %v435
      %v438 = vshrl.u32 %v218, 16
      %v440 = vrot.slane %v438, 4
      %v441 = vshll.u32 %v218, 16
      %v443 = vrot.slane %v441, 5
      %v444 = vor.u32 %v440, %v443
      %v445 = vrot.slane %v444, 4
      %v447 = vshll.u32 %v219, 16
      %v449 = vrot.slane %v447, 5
      %v450 = vsel %vm244, %v445, %v449
      %v451 = vshrl.u32 %v219, 16
      %v453 = vrot.slane %v451, 4
      %v454 = vor.u32 %v453, %v449
      %v455 = vrot.slane %v454, 4
      %v457 = vshll.u32 %v220, 16
      %v459 = vrot.slane %v457, 5
      %v460 = vsel %vm244, %v455, %v459
      %v462 = vshrl.u32 %v221, 16
      %v464 = vrot.slane %v462, 4
      %v465 = vshll.u32 %v221, 16
      %v467 = vrot.slane %v465, 5
      %v468 = vor.u32 %v464, %v467
      %v469 = vrot.slane %v468, 4
      %v471 = vshll.u32 %v222, 16
      %v473 = vrot.slane %v471, 5
      %v474 = vsel %vm244, %v469, %v473
      %v475 = vshrl.u32 %v222, 16
      %v477 = vrot.slane %v475, 4
      %v478 = vor.u32 %v477, %v473
      %v479 = vrot.slane %v478, 4
      %v481 = vshll.u32 %v223, 16
      %v483 = vrot.slane %v481, 5
      %v484 = vsel %vm244, %v479, %v483
      %v486 = vshrl.u32 %v224, 16
      %v488 = vrot.slane %v486, 4
      %v489 = vshll.u32 %v224, 16
      %v491 = vrot.slane %v489, 5
      %v492 = vor.u32 %v488, %v491
      %v493 = vrot.slane %v492, 4
      %v495 = vshll.u32 %v225, 16
      %v497 = vrot.slane %v495, 5
      %v498 = vsel %vm244, %v493, %v497
      %v499 = vshrl.u32 %v225, 16
      %v501 = vrot.slane %v499, 4
      %v502 = vor.u32 %v501, %v497
      %v503 = vrot.slane %v502, 4
      %v505 = vshll.u32 %v226, 16
      %v507 = vrot.slane %v505, 5
      %v508 = vsel %vm244, %v503, %v507
      %v510 = vshrl.u32 %v227, 16
      %v512 = vrot.slane %v510, 4
      %v513 = vshll.u32 %v227, 16
      %v515 = vrot.slane %v513, 5
      %v516 = vor.u32 %v512, %v515
      %v517 = vrot.slane %v516, 4
      %v519 = vshll.u32 %v228, 16
      %v521 = vrot.slane %v519, 5
      %v522 = vsel %vm244, %v517, %v521
      %v523 = vshrl.u32 %v228, 16
      %v525 = vrot.slane %v523, 4
      %v526 = vor.u32 %v525, %v521
      %v527 = vrot.slane %v526, 4
      %v529 = vshll.u32 %v229, 16
      %v531 = vrot.slane %v529, 5
      %v532 = vsel %vm244, %v527, %v531
      %v534 = vshrl.u32 %v230, 16
      %v536 = vrot.slane %v534, 4
      %v537 = vshll.u32 %v230, 16
      %v539 = vrot.slane %v537, 5
      %v540 = vor.u32 %v536, %v539
      %v541 = vrot.slane %v540, 4
      %v543 = vshll.u32 %v231, 16
      %v545 = vrot.slane %v543, 5
      %v546 = vsel %vm244, %v541, %v545
      %v547 = vshrl.u32 %v231, 16
      %v549 = vrot.slane %v547, 4
      %v550 = vor.u32 %v549, %v545
      %v551 = vrot.slane %v550, 4
      %v553 = vshll.u32 %v232, 16
      %v555 = vrot.slane %v553, 5
      %v556 = vsel %vm244, %v551, %v555
      %v558 = vshrl.u32 %v233, 16
      %v560 = vrot.slane %v558, 4
      %v561 = vshll.u32 %v233, 16
      %v563 = vrot.slane %v561, 5
      %v564 = vor.u32 %v560, %v563
      %v565 = vrot.slane %v564, 4
      %v567 = vshll.u32 %v234, 16
      %v569 = vrot.slane %v567, 5
      %v570 = vsel %vm244, %v565, %v569
      %v571 = vshrl.u32 %v234, 16
      %v573 = vrot.slane %v571, 4
      %v574 = vor.u32 %v573, %v569
      %v575 = vrot.slane %v574, 4
      %v577 = vshll.u32 %v235, 16
      %v579 = vrot.slane %v577, 5
      %v580 = vsel %vm244, %v575, %v579
      %v582 = vshrl.u32 %v236, 16
      %v584 = vrot.slane %v582, 4
      %v585 = vshll.u32 %v236, 16
      %v587 = vrot.slane %v585, 5
      %v588 = vor.u32 %v584, %v587
      %v589 = vrot.slane %v588, 4
      %v591 = vshll.u32 %v237, 16
      %v593 = vrot.slane %v591, 5
      %v594 = vsel %vm244, %v589, %v593
      %v595 = vshrl.u32 %v237, 16
      %v597 = vrot.slane %v595, 4
      %v598 = vor.u32 %v597, %v593
      %v599 = vrot.slane %v598, 4
      %v601 = vshll.u32 %v238, 16
      %v603 = vrot.slane %v601, 5
      %v604 = vsel %vm244, %v599, %v603
      %v606 = vshrl.u32 %v239, 16
      %v608 = vrot.slane %v606, 4
      %v609 = vshll.u32 %v239, 16
      %v611 = vrot.slane %v609, 5
      %v612 = vor.u32 %v608, %v611
      %v613 = vrot.slane %v612, 4
      %v615 = vshll.u32 %v240, 16
      %v617 = vrot.slane %v615, 5
      %v618 = vsel %vm244, %v613, %v617
      %v619 = vshrl.u32 %v240, 16
      %v621 = vrot.slane %v619, 4
      %v622 = vor.u32 %v621, %v617
      %v623 = vrot.slane %v622, 4
      %v625 = vshll.u32 %v241, 16
      %v627 = vrot.slane %v625, 5
      %v628 = vsel %vm244, %v623, %v627
      %vm677 = vcmask 1042432
      %vm678 = vcmask 1046532
      %vm679 = vmor %vm677, %vm678
      %v680 = vrot.slane %v194, 5
      %v681 = vrot.slane %v680, 4
      %v682 = vrot.slane %v195, 5
      %v683 = vsel %vm679, %v681, %v682
      %v684 = vrot.slane %v682, 4
      %v685 = vrot.slane %v196, 5
      %v686 = vsel %vm679, %v684, %v685
      %v687 = vrot.slane %v197, 5
      %v688 = vrot.slane %v687, 4
      %v689 = vrot.slane %v198, 5
      %v690 = vsel %vm679, %v688, %v689
      %v691 = vrot.slane %v689, 4
      %v692 = vrot.slane %v199, 5
      %v693 = vsel %vm679, %v691, %v692
      %v694 = vrot.slane %v200, 5
      %v695 = vrot.slane %v694, 4
      %v696 = vrot.slane %v201, 5
      %v697 = vsel %vm679, %v695, %v696
      %v698 = vrot.slane %v696, 4
      %v699 = vrot.slane %v202, 5
      %v700 = vsel %vm679, %v698, %v699
      %v701 = vrot.slane %v203, 5
      %v702 = vrot.slane %v701, 4
      %v703 = vrot.slane %v204, 5
      %v704 = vsel %vm679, %v702, %v703
      %v705 = vrot.slane %v703, 4
      %v706 = vrot.slane %v205, 5
      %v707 = vsel %vm679, %v705, %v706
      %v708 = vrot.slane %v206, 5
      %v709 = vrot.slane %v708, 4
      %v710 = vrot.slane %v207, 5
      %v711 = vsel %vm679, %v709, %v710
      %v712 = vrot.slane %v710, 4
      %v713 = vrot.slane %v208, 5
      %v714 = vsel %vm679, %v712, %v713
      %v715 = vrot.slane %v209, 5
      %v716 = vrot.slane %v715, 4
      %v717 = vrot.slane %v210, 5
      %v718 = vsel %vm679, %v716, %v717
      %v719 = vrot.slane %v717, 4
      %v720 = vrot.slane %v211, 5
      %v721 = vsel %vm679, %v719, %v720
      %v722 = vrot.slane %v212, 5
      %v723 = vrot.slane %v722, 4
      %v724 = vrot.slane %v213, 5
      %v725 = vsel %vm679, %v723, %v724
      %v726 = vrot.slane %v724, 4
      %v727 = vrot.slane %v214, 5
      %v728 = vsel %vm679, %v726, %v727
      %v729 = vrot.slane %v215, 5
      %v730 = vrot.slane %v729, 4
      %v731 = vrot.slane %v216, 5
      %v732 = vsel %vm679, %v730, %v731
      %v733 = vrot.slane %v731, 4
      %v734 = vrot.slane %v217, 5
      %v735 = vsel %vm679, %v733, %v734
      %v736 = vrot.slane %v218, 5
      %v737 = vrot.slane %v736, 4
      %v738 = vrot.slane %v219, 5
      %v739 = vsel %vm679, %v737, %v738
      %v740 = vrot.slane %v738, 4
      %v741 = vrot.slane %v220, 5
      %v742 = vsel %vm679, %v740, %v741
      %v743 = vrot.slane %v221, 5
      %v744 = vrot.slane %v743, 4
      %v745 = vrot.slane %v222, 5
      %v746 = vsel %vm679, %v744, %v745
      %v747 = vrot.slane %v745, 4
      %v748 = vrot.slane %v223, 5
      %v749 = vsel %vm679, %v747, %v748
      %v750 = vrot.slane %v224, 5
      %v751 = vrot.slane %v750, 4
      %v752 = vrot.slane %v225, 5
      %v753 = vsel %vm679, %v751, %v752
      %v754 = vrot.slane %v752, 4
      %v755 = vrot.slane %v226, 5
      %v756 = vsel %vm679, %v754, %v755
      %v757 = vrot.slane %v227, 5
      %v758 = vrot.slane %v757, 4
      %v759 = vrot.slane %v228, 5
      %v760 = vsel %vm679, %v758, %v759
      %v761 = vrot.slane %v759, 4
      %v762 = vrot.slane %v229, 5
      %v763 = vsel %vm679, %v761, %v762
      %v764 = vrot.slane %v230, 5
      %v765 = vrot.slane %v764, 4
      %v766 = vrot.slane %v231, 5
      %v767 = vsel %vm679, %v765, %v766
      %v768 = vrot.slane %v766, 4
      %v769 = vrot.slane %v232, 5
      %v770 = vsel %vm679, %v768, %v769
      %v771 = vrot.slane %v233, 5
      %v772 = vrot.slane %v771, 4
      %v773 = vrot.slane %v234, 5
      %v774 = vsel %vm679, %v772, %v773
      %v775 = vrot.slane %v773, 4
      %v776 = vrot.slane %v235, 5
      %v777 = vsel %vm679, %v775, %v776
      %v778 = vrot.slane %v236, 5
      %v779 = vrot.slane %v778, 4
      %v780 = vrot.slane %v237, 5
      %v781 = vsel %vm679, %v779, %v780
      %v782 = vrot.slane %v780, 4
      %v783 = vrot.slane %v238, 5
      %v784 = vsel %vm679, %v782, %v783
      %v785 = vrot.slane %v239, 5
      %v786 = vrot.slane %v785, 4
      %v787 = vrot.slane %v240, 5
      %v788 = vsel %vm679, %v786, %v787
      %v789 = vrot.slane %v787, 4
      %v790 = vrot.slane %v241, 5
      %v791 = vsel %vm679, %v789, %v790
      %s792 = sadd.s32 %s190, 1
      %s793 = smul.u32 %s792, 3
      %s794 = smul.addr %s793, 4
      %s795 = scalar_lea.vmem %s172, %s794
      %v796 = vld [vmem:[%s795] sm:$0xf]
      %v797 = vld [vmem:[%s795 + $0x4] sm:$0xf]
      %v798 = vld [vmem:[%s795 + $0x8] sm:$0x1]
      %v799 = vld [vmem:[%s795 + $0xc] sm:$0xf]
      %v800 = vld [vmem:[%s795 + $0x10] sm:$0xf]
      %v801 = vld [vmem:[%s795 + $0x14] sm:$0x1]
      %v802 = vld [vmem:[%s795 + $0x18] sm:$0xf]
      %v803 = vld [vmem:[%s795 + $0x1c] sm:$0xf]
      %v804 = vld [vmem:[%s795 + $0x20] sm:$0x1]
      %v805 = vld [vmem:[%s795 + $0x24] sm:$0xf]
      %v806 = vld [vmem:[%s795 + $0x28] sm:$0xf]
      %v807 = vld [vmem:[%s795 + $0x2c] sm:$0x1]
      %v808 = vld [vmem:[%s795 + $0x30] sm:$0xf]
      %v809 = vld [vmem:[%s795 + $0x34] sm:$0xf]
      %v810 = vld [vmem:[%s795 + $0x38] sm:$0x1]
      %v811 = vld [vmem:[%s795 + $0x3c] sm:$0xf]
      %v812 = vld [vmem:[%s795 + $0x40] sm:$0xf]
      %v813 = vld [vmem:[%s795 + $0x44] sm:$0x1]
      %v814 = vld [vmem:[%s795 + $0x48] sm:$0xf]
      %v815 = vld [vmem:[%s795 + $0x4c] sm:$0xf]
      %v816 = vld [vmem:[%s795 + $0x50] sm:$0x1]
      %v817 = vld [vmem:[%s795 + $0x54] sm:$0xf]
      %v818 = vld [vmem:[%s795 + $0x58] sm:$0xf]
      %v819 = vld [vmem:[%s795 + $0x5c] sm:$0x1]
      %v820 = vld [vmem:[%s795 + $0x60] sm:$0xf]
      %v821 = vld [vmem:[%s795 + $0x64] sm:$0xf]
      %v822 = vld [vmem:[%s795 + $0x68] sm:$0x1]
      %v823 = vld [vmem:[%s795 + $0x6c] sm:$0xf]
      %v824 = vld [vmem:[%s795 + $0x70] sm:$0xf]
      %v825 = vld [vmem:[%s795 + $0x74] sm:$0x1]
      %v826 = vld [vmem:[%s795 + $0x78] sm:$0xf]
      %v827 = vld [vmem:[%s795 + $0x7c] sm:$0xf]
      %v828 = vld [vmem:[%s795 + $0x80] sm:$0x1]
      %v829 = vld [vmem:[%s795 + $0x84] sm:$0xf]
      %v830 = vld [vmem:[%s795 + $0x88] sm:$0xf]
      %v831 = vld [vmem:[%s795 + $0x8c] sm:$0x1]
      %v832 = vld [vmem:[%s795 + $0x90] sm:$0xf]
      %v833 = vld [vmem:[%s795 + $0x94] sm:$0xf]
      %v834 = vld [vmem:[%s795 + $0x98] sm:$0x1]
      %v835 = vld [vmem:[%s795 + $0x9c] sm:$0xf]
      %v836 = vld [vmem:[%s795 + $0xa0] sm:$0xf]
      %v837 = vld [vmem:[%s795 + $0xa4] sm:$0x1]
      %v838 = vld [vmem:[%s795 + $0xa8] sm:$0xf]
      %v839 = vld [vmem:[%s795 + $0xac] sm:$0xf]
      %v840 = vld [vmem:[%s795 + $0xb0] sm:$0x1]
      %v841 = vld [vmem:[%s795 + $0xb4] sm:$0xf]
      %v842 = vld [vmem:[%s795 + $0xb8] sm:$0xf]
      %v843 = vld [vmem:[%s795 + $0xbc] sm:$0x1]
      %v845 = vshrl.u32 %v796, 16
      %v847 = vrot.slane %v845, 4
      %v848 = vshll.u32 %v796, 16
      %v850 = vrot.slane %v848, 5
      %v851 = vor.u32 %v847, %v850
      %v852 = vrot.slane %v851, 4
      %v854 = vshll.u32 %v797, 16
      %v856 = vrot.slane %v854, 5
      %v857 = vsel %vm244, %v852, %v856
      %v858 = vshrl.u32 %v797, 16
      %v860 = vrot.slane %v858, 4
      %v861 = vor.u32 %v860, %v856
      %v862 = vrot.slane %v861, 4
      %v864 = vshll.u32 %v798, 16
      %v866 = vrot.slane %v864, 5
      %v867 = vsel %vm244, %v862, %v866
      %v869 = vshrl.u32 %v799, 16
      %v871 = vrot.slane %v869, 4
      %v872 = vshll.u32 %v799, 16
      %v874 = vrot.slane %v872, 5
      %v875 = vor.u32 %v871, %v874
      %v876 = vrot.slane %v875, 4
      %v878 = vshll.u32 %v800, 16
      %v880 = vrot.slane %v878, 5
      %v881 = vsel %vm244, %v876, %v880
      %v882 = vshrl.u32 %v800, 16
      %v884 = vrot.slane %v882, 4
      %v885 = vor.u32 %v884, %v880
      %v886 = vrot.slane %v885, 4
      %v888 = vshll.u32 %v801, 16
      %v890 = vrot.slane %v888, 5
      %v891 = vsel %vm244, %v886, %v890
      %v893 = vshrl.u32 %v802, 16
      %v895 = vrot.slane %v893, 4
      %v896 = vshll.u32 %v802, 16
      %v898 = vrot.slane %v896, 5
      %v899 = vor.u32 %v895, %v898
      %v900 = vrot.slane %v899, 4
      %v902 = vshll.u32 %v803, 16
      %v904 = vrot.slane %v902, 5
      %v905 = vsel %vm244, %v900, %v904
      %v906 = vshrl.u32 %v803, 16
      %v908 = vrot.slane %v906, 4
      %v909 = vor.u32 %v908, %v904
      %v910 = vrot.slane %v909, 4
      %v912 = vshll.u32 %v804, 16
      %v914 = vrot.slane %v912, 5
      %v915 = vsel %vm244, %v910, %v914
      %v917 = vshrl.u32 %v805, 16
      %v919 = vrot.slane %v917, 4
      %v920 = vshll.u32 %v805, 16
      %v922 = vrot.slane %v920, 5
      %v923 = vor.u32 %v919, %v922
      %v924 = vrot.slane %v923, 4
      %v926 = vshll.u32 %v806, 16
      %v928 = vrot.slane %v926, 5
      %v929 = vsel %vm244, %v924, %v928
      %v930 = vshrl.u32 %v806, 16
      %v932 = vrot.slane %v930, 4
      %v933 = vor.u32 %v932, %v928
      %v934 = vrot.slane %v933, 4
      %v936 = vshll.u32 %v807, 16
      %v938 = vrot.slane %v936, 5
      %v939 = vsel %vm244, %v934, %v938
      %v941 = vshrl.u32 %v808, 16
      %v943 = vrot.slane %v941, 4
      %v944 = vshll.u32 %v808, 16
      %v946 = vrot.slane %v944, 5
      %v947 = vor.u32 %v943, %v946
      %v948 = vrot.slane %v947, 4
      %v950 = vshll.u32 %v809, 16
      %v952 = vrot.slane %v950, 5
      %v953 = vsel %vm244, %v948, %v952
      %v954 = vshrl.u32 %v809, 16
      %v956 = vrot.slane %v954, 4
      %v957 = vor.u32 %v956, %v952
      %v958 = vrot.slane %v957, 4
      %v960 = vshll.u32 %v810, 16
      %v962 = vrot.slane %v960, 5
      %v963 = vsel %vm244, %v958, %v962
      %v965 = vshrl.u32 %v811, 16
      %v967 = vrot.slane %v965, 4
      %v968 = vshll.u32 %v811, 16
      %v970 = vrot.slane %v968, 5
      %v971 = vor.u32 %v967, %v970
      %v972 = vrot.slane %v971, 4
      %v974 = vshll.u32 %v812, 16
      %v976 = vrot.slane %v974, 5
      %v977 = vsel %vm244, %v972, %v976
      %v978 = vshrl.u32 %v812, 16
      %v980 = vrot.slane %v978, 4
      %v981 = vor.u32 %v980, %v976
      %v982 = vrot.slane %v981, 4
      %v984 = vshll.u32 %v813, 16
      %v986 = vrot.slane %v984, 5
      %v987 = vsel %vm244, %v982, %v986
      %v989 = vshrl.u32 %v814, 16
      %v991 = vrot.slane %v989, 4
      %v992 = vshll.u32 %v814, 16
      %v994 = vrot.slane %v992, 5
      %v995 = vor.u32 %v991, %v994
      %v996 = vrot.slane %v995, 4
      %v998 = vshll.u32 %v815, 16
      %v1000 = vrot.slane %v998, 5
      %v1001 = vsel %vm244, %v996, %v1000
      %v1002 = vshrl.u32 %v815, 16
      %v1004 = vrot.slane %v1002, 4
      %v1005 = vor.u32 %v1004, %v1000
      %v1006 = vrot.slane %v1005, 4
      %v1008 = vshll.u32 %v816, 16
      %v1010 = vrot.slane %v1008, 5
      %v1011 = vsel %vm244, %v1006, %v1010
      %v1013 = vshrl.u32 %v817, 16
      %v1015 = vrot.slane %v1013, 4
      %v1016 = vshll.u32 %v817, 16
      %v1018 = vrot.slane %v1016, 5
      %v1019 = vor.u32 %v1015, %v1018
      %v1020 = vrot.slane %v1019, 4
      %v1022 = vshll.u32 %v818, 16
      %v1024 = vrot.slane %v1022, 5
      %v1025 = vsel %vm244, %v1020, %v1024
      %v1026 = vshrl.u32 %v818, 16
      %v1028 = vrot.slane %v1026, 4
      %v1029 = vor.u32 %v1028, %v1024
      %v1030 = vrot.slane %v1029, 4
      %v1032 = vshll.u32 %v819, 16
      %v1034 = vrot.slane %v1032, 5
      %v1035 = vsel %vm244, %v1030, %v1034
      %v1037 = vshrl.u32 %v820, 16
      %v1039 = vrot.slane %v1037, 4
      %v1040 = vshll.u32 %v820, 16
      %v1042 = vrot.slane %v1040, 5
      %v1043 = vor.u32 %v1039, %v1042
      %v1044 = vrot.slane %v1043, 4
      %v1046 = vshll.u32 %v821, 16
      %v1048 = vrot.slane %v1046, 5
      %v1049 = vsel %vm244, %v1044, %v1048
      %v1050 = vshrl.u32 %v821, 16
      %v1052 = vrot.slane %v1050, 4
      %v1053 = vor.u32 %v1052, %v1048
      %v1054 = vrot.slane %v1053, 4
      %v1056 = vshll.u32 %v822, 16
      %v1058 = vrot.slane %v1056, 5
      %v1059 = vsel %vm244, %v1054, %v1058
      %v1061 = vshrl.u32 %v823, 16
      %v1063 = vrot.slane %v1061, 4
      %v1064 = vshll.u32 %v823, 16
      %v1066 = vrot.slane %v1064, 5
      %v1067 = vor.u32 %v1063, %v1066
      %v1068 = vrot.slane %v1067, 4
      %v1070 = vshll.u32 %v824, 16
      %v1072 = vrot.slane %v1070, 5
      %v1073 = vsel %vm244, %v1068, %v1072
      %v1074 = vshrl.u32 %v824, 16
      %v1076 = vrot.slane %v1074, 4
      %v1077 = vor.u32 %v1076, %v1072
      %v1078 = vrot.slane %v1077, 4
      %v1080 = vshll.u32 %v825, 16
      %v1082 = vrot.slane %v1080, 5
      %v1083 = vsel %vm244, %v1078, %v1082
      %v1085 = vshrl.u32 %v826, 16
      %v1087 = vrot.slane %v1085, 4
      %v1088 = vshll.u32 %v826, 16
      %v1090 = vrot.slane %v1088, 5
      %v1091 = vor.u32 %v1087, %v1090
      %v1092 = vrot.slane %v1091, 4
      %v1094 = vshll.u32 %v827, 16
      %v1096 = vrot.slane %v1094, 5
      %v1097 = vsel %vm244, %v1092, %v1096
      %v1098 = vshrl.u32 %v827, 16
      %v1100 = vrot.slane %v1098, 4
      %v1101 = vor.u32 %v1100, %v1096
      %v1102 = vrot.slane %v1101, 4
      %v1104 = vshll.u32 %v828, 16
      %v1106 = vrot.slane %v1104, 5
      %v1107 = vsel %vm244, %v1102, %v1106
      %v1109 = vshrl.u32 %v829, 16
      %v1111 = vrot.slane %v1109, 4
      %v1112 = vshll.u32 %v829, 16
      %v1114 = vrot.slane %v1112, 5
      %v1115 = vor.u32 %v1111, %v1114
      %v1116 = vrot.slane %v1115, 4
      %v1118 = vshll.u32 %v830, 16
      %v1120 = vrot.slane %v1118, 5
      %v1121 = vsel %vm244, %v1116, %v1120
      %v1122 = vshrl.u32 %v830, 16
      %v1124 = vrot.slane %v1122, 4
      %v1125 = vor.u32 %v1124, %v1120
      %v1126 = vrot.slane %v1125, 4
      %v1128 = vshll.u32 %v831, 16
      %v1130 = vrot.slane %v1128, 5
      %v1131 = vsel %vm244, %v1126, %v1130
      %v1133 = vshrl.u32 %v832, 16
      %v1135 = vrot.slane %v1133, 4
      %v1136 = vshll.u32 %v832, 16
      %v1138 = vrot.slane %v1136, 5
      %v1139 = vor.u32 %v1135, %v1138
      %v1140 = vrot.slane %v1139, 4
      %v1142 = vshll.u32 %v833, 16
      %v1144 = vrot.slane %v1142, 5
      %v1145 = vsel %vm244, %v1140, %v1144
      %v1146 = vshrl.u32 %v833, 16
      %v1148 = vrot.slane %v1146, 4
      %v1149 = vor.u32 %v1148, %v1144
      %v1150 = vrot.slane %v1149, 4
      %v1152 = vshll.u32 %v834, 16
      %v1154 = vrot.slane %v1152, 5
      %v1155 = vsel %vm244, %v1150, %v1154
      %v1157 = vshrl.u32 %v835, 16
      %v1159 = vrot.slane %v1157, 4
      %v1160 = vshll.u32 %v835, 16
      %v1162 = vrot.slane %v1160, 5
      %v1163 = vor.u32 %v1159, %v1162
      %v1164 = vrot.slane %v1163, 4
      %v1166 = vshll.u32 %v836, 16
      %v1168 = vrot.slane %v1166, 5
      %v1169 = vsel %vm244, %v1164, %v1168
      %v1170 = vshrl.u32 %v836, 16
      %v1172 = vrot.slane %v1170, 4
      %v1173 = vor.u32 %v1172, %v1168
      %v1174 = vrot.slane %v1173, 4
      %v1176 = vshll.u32 %v837, 16
      %v1178 = vrot.slane %v1176, 5
      %v1179 = vsel %vm244, %v1174, %v1178
      %v1181 = vshrl.u32 %v838, 16
      %v1183 = vrot.slane %v1181, 4
      %v1184 = vshll.u32 %v838, 16
      %v1186 = vrot.slane %v1184, 5
      %v1187 = vor.u32 %v1183, %v1186
      %v1188 = vrot.slane %v1187, 4
      %v1190 = vshll.u32 %v839, 16
      %v1192 = vrot.slane %v1190, 5
      %v1193 = vsel %vm244, %v1188, %v1192
      %v1194 = vshrl.u32 %v839, 16
      %v1196 = vrot.slane %v1194, 4
      %v1197 = vor.u32 %v1196, %v1192
      %v1198 = vrot.slane %v1197, 4
      %v1200 = vshll.u32 %v840, 16
      %v1202 = vrot.slane %v1200, 5
      %v1203 = vsel %vm244, %v1198, %v1202
      %v1205 = vshrl.u32 %v841, 16
      %v1207 = vrot.slane %v1205, 4
      %v1208 = vshll.u32 %v841, 16
      %v1210 = vrot.slane %v1208, 5
      %v1211 = vor.u32 %v1207, %v1210
      %v1212 = vrot.slane %v1211, 4
      %v1214 = vshll.u32 %v842, 16
      %v1216 = vrot.slane %v1214, 5
      %v1217 = vsel %vm244, %v1212, %v1216
      %v1218 = vshrl.u32 %v842, 16
      %v1220 = vrot.slane %v1218, 4
      %v1221 = vor.u32 %v1220, %v1216
      %v1222 = vrot.slane %v1221, 4
      %v1224 = vshll.u32 %v843, 16
      %v1226 = vrot.slane %v1224, 5
      %v1227 = vsel %vm244, %v1222, %v1226
      %v1276 = vrot.slane %v796, 5
      %v1277 = vrot.slane %v1276, 4
      %v1278 = vrot.slane %v797, 5
      %v1279 = vsel %vm679, %v1277, %v1278
      %v1280 = vrot.slane %v1278, 4
      %v1281 = vrot.slane %v798, 5
      %v1282 = vsel %vm679, %v1280, %v1281
      %v1283 = vrot.slane %v799, 5
      %v1284 = vrot.slane %v1283, 4
      %v1285 = vrot.slane %v800, 5
      %v1286 = vsel %vm679, %v1284, %v1285
      %v1287 = vrot.slane %v1285, 4
      %v1288 = vrot.slane %v801, 5
      %v1289 = vsel %vm679, %v1287, %v1288
      %v1290 = vrot.slane %v802, 5
      %v1291 = vrot.slane %v1290, 4
      %v1292 = vrot.slane %v803, 5
      %v1293 = vsel %vm679, %v1291, %v1292
      %v1294 = vrot.slane %v1292, 4
      %v1295 = vrot.slane %v804, 5
      %v1296 = vsel %vm679, %v1294, %v1295
      %v1297 = vrot.slane %v805, 5
      %v1298 = vrot.slane %v1297, 4
      %v1299 = vrot.slane %v806, 5
      %v1300 = vsel %vm679, %v1298, %v1299
      %v1301 = vrot.slane %v1299, 4
      %v1302 = vrot.slane %v807, 5
      %v1303 = vsel %vm679, %v1301, %v1302
      %v1304 = vrot.slane %v808, 5
      %v1305 = vrot.slane %v1304, 4
      %v1306 = vrot.slane %v809, 5
      %v1307 = vsel %vm679, %v1305, %v1306
      %v1308 = vrot.slane %v1306, 4
      %v1309 = vrot.slane %v810, 5
      %v1310 = vsel %vm679, %v1308, %v1309
      %v1311 = vrot.slane %v811, 5
      %v1312 = vrot.slane %v1311, 4
      %v1313 = vrot.slane %v812, 5
      %v1314 = vsel %vm679, %v1312, %v1313
      %v1315 = vrot.slane %v1313, 4
      %v1316 = vrot.slane %v813, 5
      %v1317 = vsel %vm679, %v1315, %v1316
      %v1318 = vrot.slane %v814, 5
      %v1319 = vrot.slane %v1318, 4
      %v1320 = vrot.slane %v815, 5
      %v1321 = vsel %vm679, %v1319, %v1320
      %v1322 = vrot.slane %v1320, 4
      %v1323 = vrot.slane %v816, 5
      %v1324 = vsel %vm679, %v1322, %v1323
      %v1325 = vrot.slane %v817, 5
      %v1326 = vrot.slane %v1325, 4
      %v1327 = vrot.slane %v818, 5
      %v1328 = vsel %vm679, %v1326, %v1327
      %v1329 = vrot.slane %v1327, 4
      %v1330 = vrot.slane %v819, 5
      %v1331 = vsel %vm679, %v1329, %v1330
      %v1332 = vrot.slane %v820, 5
      %v1333 = vrot.slane %v1332, 4
      %v1334 = vrot.slane %v821, 5
      %v1335 = vsel %vm679, %v1333, %v1334
      %v1336 = vrot.slane %v1334, 4
      %v1337 = vrot.slane %v822, 5
      %v1338 = vsel %vm679, %v1336, %v1337
      %v1339 = vrot.slane %v823, 5
      %v1340 = vrot.slane %v1339, 4
      %v1341 = vrot.slane %v824, 5
      %v1342 = vsel %vm679, %v1340, %v1341
      %v1343 = vrot.slane %v1341, 4
      %v1344 = vrot.slane %v825, 5
      %v1345 = vsel %vm679, %v1343, %v1344
      %v1346 = vrot.slane %v826, 5
      %v1347 = vrot.slane %v1346, 4
      %v1348 = vrot.slane %v827, 5
      %v1349 = vsel %vm679, %v1347, %v1348
      %v1350 = vrot.slane %v1348, 4
      %v1351 = vrot.slane %v828, 5
      %v1352 = vsel %vm679, %v1350, %v1351
      %v1353 = vrot.slane %v829, 5
      %v1354 = vrot.slane %v1353, 4
      %v1355 = vrot.slane %v830, 5
      %v1356 = vsel %vm679, %v1354, %v1355
      %v1357 = vrot.slane %v1355, 4
      %v1358 = vrot.slane %v831, 5
      %v1359 = vsel %vm679, %v1357, %v1358
      %v1360 = vrot.slane %v832, 5
      %v1361 = vrot.slane %v1360, 4
      %v1362 = vrot.slane %v833, 5
      %v1363 = vsel %vm679, %v1361, %v1362
      %v1364 = vrot.slane %v1362, 4
      %v1365 = vrot.slane %v834, 5
      %v1366 = vsel %vm679, %v1364, %v1365
      %v1367 = vrot.slane %v835, 5
      %v1368 = vrot.slane %v1367, 4
      %v1369 = vrot.slane %v836, 5
      %v1370 = vsel %vm679, %v1368, %v1369
      %v1371 = vrot.slane %v1369, 4
      %v1372 = vrot.slane %v837, 5
      %v1373 = vsel %vm679, %v1371, %v1372
      %v1374 = vrot.slane %v838, 5
      %v1375 = vrot.slane %v1374, 4
      %v1376 = vrot.slane %v839, 5
      %v1377 = vsel %vm679, %v1375, %v1376
      %v1378 = vrot.slane %v1376, 4
      %v1379 = vrot.slane %v840, 5
      %v1380 = vsel %vm679, %v1378, %v1379
      %v1381 = vrot.slane %v841, 5
      %v1382 = vrot.slane %v1381, 4
      %v1383 = vrot.slane %v842, 5
      %v1384 = vsel %vm679, %v1382, %v1383
      %v1385 = vrot.slane %v1383, 4
      %v1386 = vrot.slane %v843, 5
      %v1387 = vsel %vm679, %v1385, %v1386
      %s1388 = sadd.s32 %s190, 2
      %s1389 = smul.u32 %s1388, 3
      %s1390 = smul.addr %s1389, 4
      %s1391 = scalar_lea.vmem %s172, %s1390
      %v1392 = vld [vmem:[%s1391] sm:$0xf]
      %v1393 = vld [vmem:[%s1391 + $0x4] sm:$0xf]
      %v1394 = vld [vmem:[%s1391 + $0x8] sm:$0x1]
      %v1395 = vld [vmem:[%s1391 + $0xc] sm:$0xf]
      %v1396 = vld [vmem:[%s1391 + $0x10] sm:$0xf]
      %v1397 = vld [vmem:[%s1391 + $0x14] sm:$0x1]
      %v1398 = vld [vmem:[%s1391 + $0x18] sm:$0xf]
      %v1399 = vld [vmem:[%s1391 + $0x1c] sm:$0xf]
      %v1400 = vld [vmem:[%s1391 + $0x20] sm:$0x1]
      %v1401 = vld [vmem:[%s1391 + $0x24] sm:$0xf]
      %v1402 = vld [vmem:[%s1391 + $0x28] sm:$0xf]
      %v1403 = vld [vmem:[%s1391 + $0x2c] sm:$0x1]
      %v1404 = vld [vmem:[%s1391 + $0x30] sm:$0xf]
      %v1405 = vld [vmem:[%s1391 + $0x34] sm:$0xf]
      %v1406 = vld [vmem:[%s1391 + $0x38] sm:$0x1]
      %v1407 = vld [vmem:[%s1391 + $0x3c] sm:$0xf]
      %v1408 = vld [vmem:[%s1391 + $0x40] sm:$0xf]
      %v1409 = vld [vmem:[%s1391 + $0x44] sm:$0x1]
      %v1410 = vld [vmem:[%s1391 + $0x48] sm:$0xf]
      %v1411 = vld [vmem:[%s1391 + $0x4c] sm:$0xf]
      %v1412 = vld [vmem:[%s1391 + $0x50] sm:$0x1]
      %v1413 = vld [vmem:[%s1391 + $0x54] sm:$0xf]
      %v1414 = vld [vmem:[%s1391 + $0x58] sm:$0xf]
      %v1415 = vld [vmem:[%s1391 + $0x5c] sm:$0x1]
      %v1416 = vld [vmem:[%s1391 + $0x60] sm:$0xf]
      %v1417 = vld [vmem:[%s1391 + $0x64] sm:$0xf]
      %v1418 = vld [vmem:[%s1391 + $0x68] sm:$0x1]
      %v1419 = vld [vmem:[%s1391 + $0x6c] sm:$0xf]
      %v1420 = vld [vmem:[%s1391 + $0x70] sm:$0xf]
      %v1421 = vld [vmem:[%s1391 + $0x74] sm:$0x1]
      %v1422 = vld [vmem:[%s1391 + $0x78] sm:$0xf]
      %v1423 = vld [vmem:[%s1391 + $0x7c] sm:$0xf]
      %v1424 = vld [vmem:[%s1391 + $0x80] sm:$0x1]
      %v1425 = vld [vmem:[%s1391 + $0x84] sm:$0xf]
      %v1426 = vld [vmem:[%s1391 + $0x88] sm:$0xf]
      %v1427 = vld [vmem:[%s1391 + $0x8c] sm:$0x1]
      %v1428 = vld [vmem:[%s1391 + $0x90] sm:$0xf]
      %v1429 = vld [vmem:[%s1391 + $0x94] sm:$0xf]
      %v1430 = vld [vmem:[%s1391 + $0x98] sm:$0x1]
      %v1431 = vld [vmem:[%s1391 + $0x9c] sm:$0xf]
      %v1432 = vld [vmem:[%s1391 + $0xa0] sm:$0xf]
      %v1433 = vld [vmem:[%s1391 + $0xa4] sm:$0x1]
      %v1434 = vld [vmem:[%s1391 + $0xa8] sm:$0xf]
      %v1435 = vld [vmem:[%s1391 + $0xac] sm:$0xf]
      %v1436 = vld [vmem:[%s1391 + $0xb0] sm:$0x1]
      %v1437 = vld [vmem:[%s1391 + $0xb4] sm:$0xf]
      %v1438 = vld [vmem:[%s1391 + $0xb8] sm:$0xf]
      %v1439 = vld [vmem:[%s1391 + $0xbc] sm:$0x1]
      %v1441 = vshrl.u32 %v1392, 16
      %v1443 = vrot.slane %v1441, 4
      %v1444 = vshll.u32 %v1392, 16
      %v1446 = vrot.slane %v1444, 5
      %v1447 = vor.u32 %v1443, %v1446
      %v1448 = vrot.slane %v1447, 4
      %v1450 = vshll.u32 %v1393, 16
      %v1452 = vrot.slane %v1450, 5
      %v1453 = vsel %vm244, %v1448, %v1452
      %v1454 = vshrl.u32 %v1393, 16
      %v1456 = vrot.slane %v1454, 4
      %v1457 = vor.u32 %v1456, %v1452
      %v1458 = vrot.slane %v1457, 4
      %v1460 = vshll.u32 %v1394, 16
      %v1462 = vrot.slane %v1460, 5
      %v1463 = vsel %vm244, %v1458, %v1462
      %v1465 = vshrl.u32 %v1395, 16
      %v1467 = vrot.slane %v1465, 4
      %v1468 = vshll.u32 %v1395, 16
      %v1470 = vrot.slane %v1468, 5
      %v1471 = vor.u32 %v1467, %v1470
      %v1472 = vrot.slane %v1471, 4
      %v1474 = vshll.u32 %v1396, 16
      %v1476 = vrot.slane %v1474, 5
      %v1477 = vsel %vm244, %v1472, %v1476
      %v1478 = vshrl.u32 %v1396, 16
      %v1480 = vrot.slane %v1478, 4
      %v1481 = vor.u32 %v1480, %v1476
      %v1482 = vrot.slane %v1481, 4
      %v1484 = vshll.u32 %v1397, 16
      %v1486 = vrot.slane %v1484, 5
      %v1487 = vsel %vm244, %v1482, %v1486
      %v1489 = vshrl.u32 %v1398, 16
      %v1491 = vrot.slane %v1489, 4
      %v1492 = vshll.u32 %v1398, 16
      %v1494 = vrot.slane %v1492, 5
      %v1495 = vor.u32 %v1491, %v1494
      %v1496 = vrot.slane %v1495, 4
      %v1498 = vshll.u32 %v1399, 16
      %v1500 = vrot.slane %v1498, 5
      %v1501 = vsel %vm244, %v1496, %v1500
      %v1502 = vshrl.u32 %v1399, 16
      %v1504 = vrot.slane %v1502, 4
      %v1505 = vor.u32 %v1504, %v1500
      %v1506 = vrot.slane %v1505, 4
      %v1508 = vshll.u32 %v1400, 16
      %v1510 = vrot.slane %v1508, 5
      %v1511 = vsel %vm244, %v1506, %v1510
      %v1513 = vshrl.u32 %v1401, 16
      %v1515 = vrot.slane %v1513, 4
      %v1516 = vshll.u32 %v1401, 16
      %v1518 = vrot.slane %v1516, 5
      %v1519 = vor.u32 %v1515, %v1518
      %v1520 = vrot.slane %v1519, 4
      %v1522 = vshll.u32 %v1402, 16
      %v1524 = vrot.slane %v1522, 5
      %v1525 = vsel %vm244, %v1520, %v1524
      %v1526 = vshrl.u32 %v1402, 16
      %v1528 = vrot.slane %v1526, 4
      %v1529 = vor.u32 %v1528, %v1524
      %v1530 = vrot.slane %v1529, 4
      %v1532 = vshll.u32 %v1403, 16
      %v1534 = vrot.slane %v1532, 5
      %v1535 = vsel %vm244, %v1530, %v1534
      %v1537 = vshrl.u32 %v1404, 16
      %v1539 = vrot.slane %v1537, 4
      %v1540 = vshll.u32 %v1404, 16
      %v1542 = vrot.slane %v1540, 5
      %v1543 = vor.u32 %v1539, %v1542
      %v1544 = vrot.slane %v1543, 4
      %v1546 = vshll.u32 %v1405, 16
      %v1548 = vrot.slane %v1546, 5
      %v1549 = vsel %vm244, %v1544, %v1548
      %v1550 = vshrl.u32 %v1405, 16
      %v1552 = vrot.slane %v1550, 4
      %v1553 = vor.u32 %v1552, %v1548
      %v1554 = vrot.slane %v1553, 4
      %v1556 = vshll.u32 %v1406, 16
      %v1558 = vrot.slane %v1556, 5
      %v1559 = vsel %vm244, %v1554, %v1558
      %v1561 = vshrl.u32 %v1407, 16
      %v1563 = vrot.slane %v1561, 4
      %v1564 = vshll.u32 %v1407, 16
      %v1566 = vrot.slane %v1564, 5
      %v1567 = vor.u32 %v1563, %v1566
      %v1568 = vrot.slane %v1567, 4
      %v1570 = vshll.u32 %v1408, 16
      %v1572 = vrot.slane %v1570, 5
      %v1573 = vsel %vm244, %v1568, %v1572
      %v1574 = vshrl.u32 %v1408, 16
      %v1576 = vrot.slane %v1574, 4
      %v1577 = vor.u32 %v1576, %v1572
      %v1578 = vrot.slane %v1577, 4
      %v1580 = vshll.u32 %v1409, 16
      %v1582 = vrot.slane %v1580, 5
      %v1583 = vsel %vm244, %v1578, %v1582
      %v1585 = vshrl.u32 %v1410, 16
      %v1587 = vrot.slane %v1585, 4
      %v1588 = vshll.u32 %v1410, 16
      %v1590 = vrot.slane %v1588, 5
      %v1591 = vor.u32 %v1587, %v1590
      %v1592 = vrot.slane %v1591, 4
      %v1594 = vshll.u32 %v1411, 16
      %v1596 = vrot.slane %v1594, 5
      %v1597 = vsel %vm244, %v1592, %v1596
      %v1598 = vshrl.u32 %v1411, 16
      %v1600 = vrot.slane %v1598, 4
      %v1601 = vor.u32 %v1600, %v1596
      %v1602 = vrot.slane %v1601, 4
      %v1604 = vshll.u32 %v1412, 16
      %v1606 = vrot.slane %v1604, 5
      %v1607 = vsel %vm244, %v1602, %v1606
      %v1609 = vshrl.u32 %v1413, 16
      %v1611 = vrot.slane %v1609, 4
      %v1612 = vshll.u32 %v1413, 16
      %v1614 = vrot.slane %v1612, 5
      %v1615 = vor.u32 %v1611, %v1614
      %v1616 = vrot.slane %v1615, 4
      %v1618 = vshll.u32 %v1414, 16
      %v1620 = vrot.slane %v1618, 5
      %v1621 = vsel %vm244, %v1616, %v1620
      %v1622 = vshrl.u32 %v1414, 16
      %v1624 = vrot.slane %v1622, 4
      %v1625 = vor.u32 %v1624, %v1620
      %v1626 = vrot.slane %v1625, 4
      %v1628 = vshll.u32 %v1415, 16
      %v1630 = vrot.slane %v1628, 5
      %v1631 = vsel %vm244, %v1626, %v1630
      %v1633 = vshrl.u32 %v1416, 16
      %v1635 = vrot.slane %v1633, 4
      %v1636 = vshll.u32 %v1416, 16
      %v1638 = vrot.slane %v1636, 5
      %v1639 = vor.u32 %v1635, %v1638
      %v1640 = vrot.slane %v1639, 4
      %v1642 = vshll.u32 %v1417, 16
      %v1644 = vrot.slane %v1642, 5
      %v1645 = vsel %vm244, %v1640, %v1644
      %v1646 = vshrl.u32 %v1417, 16
      %v1648 = vrot.slane %v1646, 4
      %v1649 = vor.u32 %v1648, %v1644
      %v1650 = vrot.slane %v1649, 4
      %v1652 = vshll.u32 %v1418, 16
      %v1654 = vrot.slane %v1652, 5
      %v1655 = vsel %vm244, %v1650, %v1654
      %v1657 = vshrl.u32 %v1419, 16
      %v1659 = vrot.slane %v1657, 4
      %v1660 = vshll.u32 %v1419, 16
      %v1662 = vrot.slane %v1660, 5
      %v1663 = vor.u32 %v1659, %v1662
      %v1664 = vrot.slane %v1663, 4
      %v1666 = vshll.u32 %v1420, 16
      %v1668 = vrot.slane %v1666, 5
      %v1669 = vsel %vm244, %v1664, %v1668
      %v1670 = vshrl.u32 %v1420, 16
      %v1672 = vrot.slane %v1670, 4
      %v1673 = vor.u32 %v1672, %v1668
      %v1674 = vrot.slane %v1673, 4
      %v1676 = vshll.u32 %v1421, 16
      %v1678 = vrot.slane %v1676, 5
      %v1679 = vsel %vm244, %v1674, %v1678
      %v1681 = vshrl.u32 %v1422, 16
      %v1683 = vrot.slane %v1681, 4
      %v1684 = vshll.u32 %v1422, 16
      %v1686 = vrot.slane %v1684, 5
      %v1687 = vor.u32 %v1683, %v1686
      %v1688 = vrot.slane %v1687, 4
      %v1690 = vshll.u32 %v1423, 16
      %v1692 = vrot.slane %v1690, 5
      %v1693 = vsel %vm244, %v1688, %v1692
      %v1694 = vshrl.u32 %v1423, 16
      %v1696 = vrot.slane %v1694, 4
      %v1697 = vor.u32 %v1696, %v1692
      %v1698 = vrot.slane %v1697, 4
      %v1700 = vshll.u32 %v1424, 16
      %v1702 = vrot.slane %v1700, 5
      %v1703 = vsel %vm244, %v1698, %v1702
      %v1705 = vshrl.u32 %v1425, 16
      %v1707 = vrot.slane %v1705, 4
      %v1708 = vshll.u32 %v1425, 16
      %v1710 = vrot.slane %v1708, 5
      %v1711 = vor.u32 %v1707, %v1710
      %v1712 = vrot.slane %v1711, 4
      %v1714 = vshll.u32 %v1426, 16
      %v1716 = vrot.slane %v1714, 5
      %v1717 = vsel %vm244, %v1712, %v1716
      %v1718 = vshrl.u32 %v1426, 16
      %v1720 = vrot.slane %v1718, 4
      %v1721 = vor.u32 %v1720, %v1716
      %v1722 = vrot.slane %v1721, 4
      %v1724 = vshll.u32 %v1427, 16
      %v1726 = vrot.slane %v1724, 5
      %v1727 = vsel %vm244, %v1722, %v1726
      %v1729 = vshrl.u32 %v1428, 16
      %v1731 = vrot.slane %v1729, 4
      %v1732 = vshll.u32 %v1428, 16
      %v1734 = vrot.slane %v1732, 5
      %v1735 = vor.u32 %v1731, %v1734
      %v1736 = vrot.slane %v1735, 4
      %v1738 = vshll.u32 %v1429, 16
      %v1740 = vrot.slane %v1738, 5
      %v1741 = vsel %vm244, %v1736, %v1740
      %v1742 = vshrl.u32 %v1429, 16
      %v1744 = vrot.slane %v1742, 4
      %v1745 = vor.u32 %v1744, %v1740
      %v1746 = vrot.slane %v1745, 4
      %v1748 = vshll.u32 %v1430, 16
      %v1750 = vrot.slane %v1748, 5
      %v1751 = vsel %vm244, %v1746, %v1750
      %v1753 = vshrl.u32 %v1431, 16
      %v1755 = vrot.slane %v1753, 4
      %v1756 = vshll.u32 %v1431, 16
      %v1758 = vrot.slane %v1756, 5
      %v1759 = vor.u32 %v1755, %v1758
      %v1760 = vrot.slane %v1759, 4
      %v1762 = vshll.u32 %v1432, 16
      %v1764 = vrot.slane %v1762, 5
      %v1765 = vsel %vm244, %v1760, %v1764
      %v1766 = vshrl.u32 %v1432, 16
      %v1768 = vrot.slane %v1766, 4
      %v1769 = vor.u32 %v1768, %v1764
      %v1770 = vrot.slane %v1769, 4
      %v1772 = vshll.u32 %v1433, 16
      %v1774 = vrot.slane %v1772, 5
      %v1775 = vsel %vm244, %v1770, %v1774
      %v1777 = vshrl.u32 %v1434, 16
      %v1779 = vrot.slane %v1777, 4
      %v1780 = vshll.u32 %v1434, 16
      %v1782 = vrot.slane %v1780, 5
      %v1783 = vor.u32 %v1779, %v1782
      %v1784 = vrot.slane %v1783, 4
      %v1786 = vshll.u32 %v1435, 16
      %v1788 = vrot.slane %v1786, 5
      %v1789 = vsel %vm244, %v1784, %v1788
      %v1790 = vshrl.u32 %v1435, 16
      %v1792 = vrot.slane %v1790, 4
      %v1793 = vor.u32 %v1792, %v1788
      %v1794 = vrot.slane %v1793, 4
      %v1796 = vshll.u32 %v1436, 16
      %v1798 = vrot.slane %v1796, 5
      %v1799 = vsel %vm244, %v1794, %v1798
      %v1801 = vshrl.u32 %v1437, 16
      %v1803 = vrot.slane %v1801, 4
      %v1804 = vshll.u32 %v1437, 16
      %v1806 = vrot.slane %v1804, 5
      %v1807 = vor.u32 %v1803, %v1806
      %v1808 = vrot.slane %v1807, 4
      %v1810 = vshll.u32 %v1438, 16
      %v1812 = vrot.slane %v1810, 5
      %v1813 = vsel %vm244, %v1808, %v1812
      %v1814 = vshrl.u32 %v1438, 16
      %v1816 = vrot.slane %v1814, 4
      %v1817 = vor.u32 %v1816, %v1812
      %v1818 = vrot.slane %v1817, 4
      %v1820 = vshll.u32 %v1439, 16
      %v1822 = vrot.slane %v1820, 5
      %v1823 = vsel %vm244, %v1818, %v1822
      %v1872 = vrot.slane %v1392, 5
      %v1873 = vrot.slane %v1872, 4
      %v1874 = vrot.slane %v1393, 5
      %v1875 = vsel %vm679, %v1873, %v1874
      %v1876 = vrot.slane %v1874, 4
      %v1877 = vrot.slane %v1394, 5
      %v1878 = vsel %vm679, %v1876, %v1877
      %v1879 = vrot.slane %v1395, 5
      %v1880 = vrot.slane %v1879, 4
      %v1881 = vrot.slane %v1396, 5
      %v1882 = vsel %vm679, %v1880, %v1881
      %v1883 = vrot.slane %v1881, 4
      %v1884 = vrot.slane %v1397, 5
      %v1885 = vsel %vm679, %v1883, %v1884
      %v1886 = vrot.slane %v1398, 5
      %v1887 = vrot.slane %v1886, 4
      %v1888 = vrot.slane %v1399, 5
      %v1889 = vsel %vm679, %v1887, %v1888
      %v1890 = vrot.slane %v1888, 4
      %v1891 = vrot.slane %v1400, 5
      %v1892 = vsel %vm679, %v1890, %v1891
      %v1893 = vrot.slane %v1401, 5
      %v1894 = vrot.slane %v1893, 4
      %v1895 = vrot.slane %v1402, 5
      %v1896 = vsel %vm679, %v1894, %v1895
      %v1897 = vrot.slane %v1895, 4
      %v1898 = vrot.slane %v1403, 5
      %v1899 = vsel %vm679, %v1897, %v1898
      %v1900 = vrot.slane %v1404, 5
      %v1901 = vrot.slane %v1900, 4
      %v1902 = vrot.slane %v1405, 5
      %v1903 = vsel %vm679, %v1901, %v1902
      %v1904 = vrot.slane %v1902, 4
      %v1905 = vrot.slane %v1406, 5
      %v1906 = vsel %vm679, %v1904, %v1905
      %v1907 = vrot.slane %v1407, 5
      %v1908 = vrot.slane %v1907, 4
      %v1909 = vrot.slane %v1408, 5
      %v1910 = vsel %vm679, %v1908, %v1909
      %v1911 = vrot.slane %v1909, 4
      %v1912 = vrot.slane %v1409, 5
      %v1913 = vsel %vm679, %v1911, %v1912
      %v1914 = vrot.slane %v1410, 5
      %v1915 = vrot.slane %v1914, 4
      %v1916 = vrot.slane %v1411, 5
      %v1917 = vsel %vm679, %v1915, %v1916
      %v1918 = vrot.slane %v1916, 4
      %v1919 = vrot.slane %v1412, 5
      %v1920 = vsel %vm679, %v1918, %v1919
      %v1921 = vrot.slane %v1413, 5
      %v1922 = vrot.slane %v1921, 4
      %v1923 = vrot.slane %v1414, 5
      %v1924 = vsel %vm679, %v1922, %v1923
      %v1925 = vrot.slane %v1923, 4
      %v1926 = vrot.slane %v1415, 5
      %v1927 = vsel %vm679, %v1925, %v1926
      %v1928 = vrot.slane %v1416, 5
      %v1929 = vrot.slane %v1928, 4
      %v1930 = vrot.slane %v1417, 5
      %v1931 = vsel %vm679, %v1929, %v1930
      %v1932 = vrot.slane %v1930, 4
      %v1933 = vrot.slane %v1418, 5
      %v1934 = vsel %vm679, %v1932, %v1933
      %v1935 = vrot.slane %v1419, 5
      %v1936 = vrot.slane %v1935, 4
      %v1937 = vrot.slane %v1420, 5
      %v1938 = vsel %vm679, %v1936, %v1937
      %v1939 = vrot.slane %v1937, 4
      %v1940 = vrot.slane %v1421, 5
      %v1941 = vsel %vm679, %v1939, %v1940
      %v1942 = vrot.slane %v1422, 5
      %v1943 = vrot.slane %v1942, 4
      %v1944 = vrot.slane %v1423, 5
      %v1945 = vsel %vm679, %v1943, %v1944
      %v1946 = vrot.slane %v1944, 4
      %v1947 = vrot.slane %v1424, 5
      %v1948 = vsel %vm679, %v1946, %v1947
      %v1949 = vrot.slane %v1425, 5
      %v1950 = vrot.slane %v1949, 4
      %v1951 = vrot.slane %v1426, 5
      %v1952 = vsel %vm679, %v1950, %v1951
      %v1953 = vrot.slane %v1951, 4
      %v1954 = vrot.slane %v1427, 5
      %v1955 = vsel %vm679, %v1953, %v1954
      %v1956 = vrot.slane %v1428, 5
      %v1957 = vrot.slane %v1956, 4
      %v1958 = vrot.slane %v1429, 5
      %v1959 = vsel %vm679, %v1957, %v1958
      %v1960 = vrot.slane %v1958, 4
      %v1961 = vrot.slane %v1430, 5
      %v1962 = vsel %vm679, %v1960, %v1961
      %v1963 = vrot.slane %v1431, 5
      %v1964 = vrot.slane %v1963, 4
      %v1965 = vrot.slane %v1432, 5
      %v1966 = vsel %vm679, %v1964, %v1965
      %v1967 = vrot.slane %v1965, 4
      %v1968 = vrot.slane %v1433, 5
      %v1969 = vsel %vm679, %v1967, %v1968
      %v1970 = vrot.slane %v1434, 5
      %v1971 = vrot.slane %v1970, 4
      %v1972 = vrot.slane %v1435, 5
      %v1973 = vsel %vm679, %v1971, %v1972
      %v1974 = vrot.slane %v1972, 4
      %v1975 = vrot.slane %v1436, 5
      %v1976 = vsel %vm679, %v1974, %v1975
      %v1977 = vrot.slane %v1437, 5
      %v1978 = vrot.slane %v1977, 4
      %v1979 = vrot.slane %v1438, 5
      %v1980 = vsel %vm679, %v1978, %v1979
      %v1981 = vrot.slane %v1979, 4
      %v1982 = vrot.slane %v1439, 5
      %v1983 = vsel %vm679, %v1981, %v1982
      %v1984 = vunpack.c.l.b16 %v194
      %v1985 = vunpack.c.l.b16 %v195
      %v1986 = vunpack.c.l.b16 %v197
      %v1987 = vunpack.c.l.b16 %v198
      %v1988 = vunpack.c.l.b16 %v200
      %v1989 = vunpack.c.l.b16 %v201
      %v1990 = vunpack.c.l.b16 %v203
      %v1991 = vunpack.c.l.b16 %v204
      %v1992 = vunpack.c.l.b16 %v206
      %v1993 = vunpack.c.l.b16 %v207
      %v1994 = vunpack.c.l.b16 %v209
      %v1995 = vunpack.c.l.b16 %v210
      %v1996 = vunpack.c.l.b16 %v212
      %v1997 = vunpack.c.l.b16 %v213
      %v1998 = vunpack.c.l.b16 %v215
      %v1999 = vunpack.c.l.b16 %v216
      %v2000 = vunpack.c.l.b16 %v218
      %v2001 = vunpack.c.l.b16 %v219
      %v2002 = vunpack.c.l.b16 %v221
      %v2003 = vunpack.c.l.b16 %v222
      %v2004 = vunpack.c.l.b16 %v224
      %v2005 = vunpack.c.l.b16 %v225
      %v2006 = vunpack.c.l.b16 %v227
      %v2007 = vunpack.c.l.b16 %v228
      %v2008 = vunpack.c.l.b16 %v230
      %v2009 = vunpack.c.l.b16 %v231
      %v2010 = vunpack.c.l.b16 %v233
      %v2011 = vunpack.c.l.b16 %v234
      %v2012 = vunpack.c.l.b16 %v236
      %v2013 = vunpack.c.l.b16 %v237
      %v2014 = vunpack.c.l.b16 %v239
      %v2015 = vunpack.c.l.b16 %v240
      %v2016 = vpack.c.b16 %v1985, %v1984
      %v2017 = vpack.c.b16 %v1987, %v1986
      %v2018 = vpack.c.b16 %v1989, %v1988
      %v2019 = vpack.c.b16 %v1991, %v1990
      %v2020 = vpack.c.b16 %v1993, %v1992
      %v2021 = vpack.c.b16 %v1995, %v1994
      %v2022 = vpack.c.b16 %v1997, %v1996
      %v2023 = vpack.c.b16 %v1999, %v1998
      %v2024 = vpack.c.b16 %v2001, %v2000
      %v2025 = vpack.c.b16 %v2003, %v2002
      %v2026 = vpack.c.b16 %v2005, %v2004
      %v2027 = vpack.c.b16 %v2007, %v2006
      %v2028 = vpack.c.b16 %v2009, %v2008
      %v2029 = vpack.c.b16 %v2011, %v2010
      %v2030 = vpack.c.b16 %v2013, %v2012
      %v2031 = vpack.c.b16 %v2015, %v2014
      %v2032 = vunpack.c.l.b16 %v258
      %v2033 = vunpack.c.l.b16 %v268
      %v2034 = vunpack.c.l.b16 %v282
      %v2035 = vunpack.c.l.b16 %v292
      %v2036 = vunpack.c.l.b16 %v306
      %v2037 = vunpack.c.l.b16 %v316
      %v2038 = vunpack.c.l.b16 %v330
      %v2039 = vunpack.c.l.b16 %v340
      %v2040 = vunpack.c.l.b16 %v354
      %v2041 = vunpack.c.l.b16 %v364
      %v2042 = vunpack.c.l.b16 %v378
      %v2043 = vunpack.c.l.b16 %v388
      %v2044 = vunpack.c.l.b16 %v402
      %v2045 = vunpack.c.l.b16 %v412
      %v2046 = vunpack.c.l.b16 %v426
      %v2047 = vunpack.c.l.b16 %v436
      %v2048 = vunpack.c.l.b16 %v450
      %v2049 = vunpack.c.l.b16 %v460
      %v2050 = vunpack.c.l.b16 %v474
      %v2051 = vunpack.c.l.b16 %v484
      %v2052 = vunpack.c.l.b16 %v498
      %v2053 = vunpack.c.l.b16 %v508
      %v2054 = vunpack.c.l.b16 %v522
      %v2055 = vunpack.c.l.b16 %v532
      %v2056 = vunpack.c.l.b16 %v546
      %v2057 = vunpack.c.l.b16 %v556
      %v2058 = vunpack.c.l.b16 %v570
      %v2059 = vunpack.c.l.b16 %v580
      %v2060 = vunpack.c.l.b16 %v594
      %v2061 = vunpack.c.l.b16 %v604
      %v2062 = vunpack.c.l.b16 %v618
      %v2063 = vunpack.c.l.b16 %v628
      %v2064 = vpack.c.b16 %v2033, %v2032
      %v2065 = vpack.c.b16 %v2035, %v2034
      %v2066 = vpack.c.b16 %v2037, %v2036
      %v2067 = vpack.c.b16 %v2039, %v2038
      %v2068 = vpack.c.b16 %v2041, %v2040
      %v2069 = vpack.c.b16 %v2043, %v2042
      %v2070 = vpack.c.b16 %v2045, %v2044
      %v2071 = vpack.c.b16 %v2047, %v2046
      %v2072 = vpack.c.b16 %v2049, %v2048
      %v2073 = vpack.c.b16 %v2051, %v2050
      %v2074 = vpack.c.b16 %v2053, %v2052
      %v2075 = vpack.c.b16 %v2055, %v2054
      %v2076 = vpack.c.b16 %v2057, %v2056
      %v2077 = vpack.c.b16 %v2059, %v2058
      %v2078 = vpack.c.b16 %v2061, %v2060
      %v2079 = vpack.c.b16 %v2063, %v2062
      %2080 = vrot.lane.b32.xlu0 %v2064, 8
      %v2081 = vpop.permute.xlu0 %2080
      %2082 = vrot.lane.b32.xlu0 %v2065, 8
      %v2083 = vpop.permute.xlu0 %2082
      %2084 = vrot.lane.b32.xlu0 %v2066, 8
      %v2085 = vpop.permute.xlu0 %2084
      %2086 = vrot.lane.b32.xlu0 %v2067, 8
      %v2087 = vpop.permute.xlu0 %2086
      %2088 = vrot.lane.b32.xlu0 %v2068, 8
      %v2089 = vpop.permute.xlu0 %2088
      %2090 = vrot.lane.b32.xlu0 %v2069, 8
      %v2091 = vpop.permute.xlu0 %2090
      %2092 = vrot.lane.b32.xlu0 %v2070, 8
      %v2093 = vpop.permute.xlu0 %2092
      %2094 = vrot.lane.b32.xlu0 %v2071, 8
      %v2095 = vpop.permute.xlu0 %2094
      %2096 = vrot.lane.b32.xlu0 %v2072, 8
      %v2097 = vpop.permute.xlu0 %2096
      %2098 = vrot.lane.b32.xlu0 %v2073, 8
      %v2099 = vpop.permute.xlu0 %2098
      %2100 = vrot.lane.b32.xlu0 %v2074, 8
      %v2101 = vpop.permute.xlu0 %2100
      %2102 = vrot.lane.b32.xlu0 %v2075, 8
      %v2103 = vpop.permute.xlu0 %2102
      %2104 = vrot.lane.b32.xlu0 %v2076, 8
      %v2105 = vpop.permute.xlu0 %2104
      %2106 = vrot.lane.b32.xlu0 %v2077, 8
      %v2107 = vpop.permute.xlu0 %2106
      %2108 = vrot.lane.b32.xlu0 %v2078, 8
      %v2109 = vpop.permute.xlu0 %2108
      %2110 = vrot.lane.b32.xlu0 %v2079, 8
      %v2111 = vpop.permute.xlu0 %2110
      %v2112 = vunpack.c.l.b16 %v683
      %v2113 = vunpack.c.l.b16 %v686
      %v2114 = vunpack.c.l.b16 %v690
      %v2115 = vunpack.c.l.b16 %v693
      %v2116 = vunpack.c.l.b16 %v697
      %v2117 = vunpack.c.l.b16 %v700
      %v2118 = vunpack.c.l.b16 %v704
      %v2119 = vunpack.c.l.b16 %v707
      %v2120 = vunpack.c.l.b16 %v711
      %v2121 = vunpack.c.l.b16 %v714
      %v2122 = vunpack.c.l.b16 %v718
      %v2123 = vunpack.c.l.b16 %v721
      %v2124 = vunpack.c.l.b16 %v725
      %v2125 = vunpack.c.l.b16 %v728
      %v2126 = vunpack.c.l.b16 %v732
      %v2127 = vunpack.c.l.b16 %v735
      %v2128 = vunpack.c.l.b16 %v739
      %v2129 = vunpack.c.l.b16 %v742
      %v2130 = vunpack.c.l.b16 %v746
      %v2131 = vunpack.c.l.b16 %v749
      %v2132 = vunpack.c.l.b16 %v753
      %v2133 = vunpack.c.l.b16 %v756
      %v2134 = vunpack.c.l.b16 %v760
      %v2135 = vunpack.c.l.b16 %v763
      %v2136 = vunpack.c.l.b16 %v767
      %v2137 = vunpack.c.l.b16 %v770
      %v2138 = vunpack.c.l.b16 %v774
      %v2139 = vunpack.c.l.b16 %v777
      %v2140 = vunpack.c.l.b16 %v781
      %v2141 = vunpack.c.l.b16 %v784
      %v2142 = vunpack.c.l.b16 %v788
      %v2143 = vunpack.c.l.b16 %v791
      %v2144 = vpack.c.b16 %v2113, %v2112
      %v2145 = vpack.c.b16 %v2115, %v2114
      %v2146 = vpack.c.b16 %v2117, %v2116
      %v2147 = vpack.c.b16 %v2119, %v2118
      %v2148 = vpack.c.b16 %v2121, %v2120
      %v2149 = vpack.c.b16 %v2123, %v2122
      %v2150 = vpack.c.b16 %v2125, %v2124
      %v2151 = vpack.c.b16 %v2127, %v2126
      %v2152 = vpack.c.b16 %v2129, %v2128
      %v2153 = vpack.c.b16 %v2131, %v2130
      %v2154 = vpack.c.b16 %v2133, %v2132
      %v2155 = vpack.c.b16 %v2135, %v2134
      %v2156 = vpack.c.b16 %v2137, %v2136
      %v2157 = vpack.c.b16 %v2139, %v2138
      %v2158 = vpack.c.b16 %v2141, %v2140
      %v2159 = vpack.c.b16 %v2143, %v2142
      %2160 = vrot.lane.b32.xlu0 %v2144, 16
      %v2161 = vpop.permute.xlu0 %2160
      %2162 = vrot.lane.b32.xlu0 %v2145, 16
      %v2163 = vpop.permute.xlu0 %2162
      %2164 = vrot.lane.b32.xlu0 %v2146, 16
      %v2165 = vpop.permute.xlu0 %2164
      %2166 = vrot.lane.b32.xlu0 %v2147, 16
      %v2167 = vpop.permute.xlu0 %2166
      %2168 = vrot.lane.b32.xlu0 %v2148, 16
      %v2169 = vpop.permute.xlu0 %2168
      %2170 = vrot.lane.b32.xlu0 %v2149, 16
      %v2171 = vpop.permute.xlu0 %2170
      %2172 = vrot.lane.b32.xlu0 %v2150, 16
      %v2173 = vpop.permute.xlu0 %2172
      %2174 = vrot.lane.b32.xlu0 %v2151, 16
      %v2175 = vpop.permute.xlu0 %2174
      %2176 = vrot.lane.b32.xlu0 %v2152, 16
      %v2177 = vpop.permute.xlu0 %2176
      %2178 = vrot.lane.b32.xlu0 %v2153, 16
      %v2179 = vpop.permute.xlu0 %2178
      %2180 = vrot.lane.b32.xlu0 %v2154, 16
      %v2181 = vpop.permute.xlu0 %2180
      %2182 = vrot.lane.b32.xlu0 %v2155, 16
      %v2183 = vpop.permute.xlu0 %2182
      %2184 = vrot.lane.b32.xlu0 %v2156, 16
      %v2185 = vpop.permute.xlu0 %2184
      %2186 = vrot.lane.b32.xlu0 %v2157, 16
      %v2187 = vpop.permute.xlu0 %2186
      %2188 = vrot.lane.b32.xlu0 %v2158, 16
      %v2189 = vpop.permute.xlu0 %2188
      %2190 = vrot.lane.b32.xlu0 %v2159, 16
      %v2191 = vpop.permute.xlu0 %2190
      %v2192 = vunpack.c.l.b16 %v796
      %v2193 = vunpack.c.l.b16 %v797
      %v2194 = vunpack.c.l.b16 %v799
      %v2195 = vunpack.c.l.b16 %v800
      %v2196 = vunpack.c.l.b16 %v802
      %v2197 = vunpack.c.l.b16 %v803
      %v2198 = vunpack.c.l.b16 %v805
      %v2199 = vunpack.c.l.b16 %v806
      %v2200 = vunpack.c.l.b16 %v808
      %v2201 = vunpack.c.l.b16 %v809
      %v2202 = vunpack.c.l.b16 %v811
      %v2203 = vunpack.c.l.b16 %v812
      %v2204 = vunpack.c.l.b16 %v814
      %v2205 = vunpack.c.l.b16 %v815
      %v2206 = vunpack.c.l.b16 %v817
      %v2207 = vunpack.c.l.b16 %v818
      %v2208 = vunpack.c.l.b16 %v820
      %v2209 = vunpack.c.l.b16 %v821
      %v2210 = vunpack.c.l.b16 %v823
      %v2211 = vunpack.c.l.b16 %v824
      %v2212 = vunpack.c.l.b16 %v826
      %v2213 = vunpack.c.l.b16 %v827
      %v2214 = vunpack.c.l.b16 %v829
      %v2215 = vunpack.c.l.b16 %v830
      %v2216 = vunpack.c.l.b16 %v832
      %v2217 = vunpack.c.l.b16 %v833
      %v2218 = vunpack.c.l.b16 %v835
      %v2219 = vunpack.c.l.b16 %v836
      %v2220 = vunpack.c.l.b16 %v838
      %v2221 = vunpack.c.l.b16 %v839
      %v2222 = vunpack.c.l.b16 %v841
      %v2223 = vunpack.c.l.b16 %v842
      %v2224 = vpack.c.b16 %v2193, %v2192
      %v2225 = vpack.c.b16 %v2195, %v2194
      %v2226 = vpack.c.b16 %v2197, %v2196
      %v2227 = vpack.c.b16 %v2199, %v2198
      %v2228 = vpack.c.b16 %v2201, %v2200
      %v2229 = vpack.c.b16 %v2203, %v2202
      %v2230 = vpack.c.b16 %v2205, %v2204
      %v2231 = vpack.c.b16 %v2207, %v2206
      %v2232 = vpack.c.b16 %v2209, %v2208
      %v2233 = vpack.c.b16 %v2211, %v2210
      %v2234 = vpack.c.b16 %v2213, %v2212
      %v2235 = vpack.c.b16 %v2215, %v2214
      %v2236 = vpack.c.b16 %v2217, %v2216
      %v2237 = vpack.c.b16 %v2219, %v2218
      %v2238 = vpack.c.b16 %v2221, %v2220
      %v2239 = vpack.c.b16 %v2223, %v2222
      %2240 = vrot.lane.b32.xlu0 %v2224, 24
      %v2241 = vpop.permute.xlu0 %2240
      %2242 = vrot.lane.b32.xlu0 %v2225, 24
      %v2243 = vpop.permute.xlu0 %2242
      %2244 = vrot.lane.b32.xlu0 %v2226, 24
      %v2245 = vpop.permute.xlu0 %2244
      %2246 = vrot.lane.b32.xlu0 %v2227, 24
      %v2247 = vpop.permute.xlu0 %2246
      %2248 = vrot.lane.b32.xlu0 %v2228, 24
      %v2249 = vpop.permute.xlu0 %2248
      %2250 = vrot.lane.b32.xlu0 %v2229, 24
      %v2251 = vpop.permute.xlu0 %2250
      %2252 = vrot.lane.b32.xlu0 %v2230, 24
      %v2253 = vpop.permute.xlu0 %2252
      %2254 = vrot.lane.b32.xlu0 %v2231, 24
      %v2255 = vpop.permute.xlu0 %2254
      %2256 = vrot.lane.b32.xlu0 %v2232, 24
      %v2257 = vpop.permute.xlu0 %2256
      %2258 = vrot.lane.b32.xlu0 %v2233, 24
      %v2259 = vpop.permute.xlu0 %2258
      %2260 = vrot.lane.b32.xlu0 %v2234, 24
      %v2261 = vpop.permute.xlu0 %2260
      %2262 = vrot.lane.b32.xlu0 %v2235, 24
      %v2263 = vpop.permute.xlu0 %2262
      %2264 = vrot.lane.b32.xlu0 %v2236, 24
      %v2265 = vpop.permute.xlu0 %2264
      %2266 = vrot.lane.b32.xlu0 %v2237, 24
      %v2267 = vpop.permute.xlu0 %2266
      %2268 = vrot.lane.b32.xlu0 %v2238, 24
      %v2269 = vpop.permute.xlu0 %2268
      %2270 = vrot.lane.b32.xlu0 %v2239, 24
      %v2271 = vpop.permute.xlu0 %2270
      %v2272 = vunpack.c.l.b16 %v857
      %v2273 = vunpack.c.l.b16 %v867
      %v2274 = vunpack.c.l.b16 %v881
      %v2275 = vunpack.c.l.b16 %v891
      %v2276 = vunpack.c.l.b16 %v905
      %v2277 = vunpack.c.l.b16 %v915
      %v2278 = vunpack.c.l.b16 %v929
      %v2279 = vunpack.c.l.b16 %v939
      %v2280 = vunpack.c.l.b16 %v953
      %v2281 = vunpack.c.l.b16 %v963
      %v2282 = vunpack.c.l.b16 %v977
      %v2283 = vunpack.c.l.b16 %v987
      %v2284 = vunpack.c.l.b16 %v1001
      %v2285 = vunpack.c.l.b16 %v1011
      %v2286 = vunpack.c.l.b16 %v1025
      %v2287 = vunpack.c.l.b16 %v1035
      %v2288 = vunpack.c.l.b16 %v1049
      %v2289 = vunpack.c.l.b16 %v1059
      %v2290 = vunpack.c.l.b16 %v1073
      %v2291 = vunpack.c.l.b16 %v1083
      %v2292 = vunpack.c.l.b16 %v1097
      %v2293 = vunpack.c.l.b16 %v1107
      %v2294 = vunpack.c.l.b16 %v1121
      %v2295 = vunpack.c.l.b16 %v1131
      %v2296 = vunpack.c.l.b16 %v1145
      %v2297 = vunpack.c.l.b16 %v1155
      %v2298 = vunpack.c.l.b16 %v1169
      %v2299 = vunpack.c.l.b16 %v1179
      %v2300 = vunpack.c.l.b16 %v1193
      %v2301 = vunpack.c.l.b16 %v1203
      %v2302 = vunpack.c.l.b16 %v1217
      %v2303 = vunpack.c.l.b16 %v1227
      %v2304 = vpack.c.b16 %v2273, %v2272
      %v2305 = vpack.c.b16 %v2275, %v2274
      %v2306 = vpack.c.b16 %v2277, %v2276
      %v2307 = vpack.c.b16 %v2279, %v2278
      %v2308 = vpack.c.b16 %v2281, %v2280
      %v2309 = vpack.c.b16 %v2283, %v2282
      %v2310 = vpack.c.b16 %v2285, %v2284
      %v2311 = vpack.c.b16 %v2287, %v2286
      %v2312 = vpack.c.b16 %v2289, %v2288
      %v2313 = vpack.c.b16 %v2291, %v2290
      %v2314 = vpack.c.b16 %v2293, %v2292
      %v2315 = vpack.c.b16 %v2295, %v2294
      %v2316 = vpack.c.b16 %v2297, %v2296
      %v2317 = vpack.c.b16 %v2299, %v2298
      %v2318 = vpack.c.b16 %v2301, %v2300
      %v2319 = vpack.c.b16 %v2303, %v2302
      %2320 = vrot.lane.b32.xlu0 %v2304, 32
      %v2321 = vpop.permute.xlu0 %2320
      %2322 = vrot.lane.b32.xlu0 %v2305, 32
      %v2323 = vpop.permute.xlu0 %2322
      %2324 = vrot.lane.b32.xlu0 %v2306, 32
      %v2325 = vpop.permute.xlu0 %2324
      %2326 = vrot.lane.b32.xlu0 %v2307, 32
      %v2327 = vpop.permute.xlu0 %2326
      %2328 = vrot.lane.b32.xlu0 %v2308, 32
      %v2329 = vpop.permute.xlu0 %2328
      %2330 = vrot.lane.b32.xlu0 %v2309, 32
      %v2331 = vpop.permute.xlu0 %2330
      %2332 = vrot.lane.b32.xlu0 %v2310, 32
      %v2333 = vpop.permute.xlu0 %2332
      %2334 = vrot.lane.b32.xlu0 %v2311, 32
      %v2335 = vpop.permute.xlu0 %2334
      %2336 = vrot.lane.b32.xlu0 %v2312, 32
      %v2337 = vpop.permute.xlu0 %2336
      %2338 = vrot.lane.b32.xlu0 %v2313, 32
      %v2339 = vpop.permute.xlu0 %2338
      %2340 = vrot.lane.b32.xlu0 %v2314, 32
      %v2341 = vpop.permute.xlu0 %2340
      %2342 = vrot.lane.b32.xlu0 %v2315, 32
      %v2343 = vpop.permute.xlu0 %2342
      %2344 = vrot.lane.b32.xlu0 %v2316, 32
      %v2345 = vpop.permute.xlu0 %2344
      %2346 = vrot.lane.b32.xlu0 %v2317, 32
      %v2347 = vpop.permute.xlu0 %2346
      %2348 = vrot.lane.b32.xlu0 %v2318, 32
      %v2349 = vpop.permute.xlu0 %2348
      %2350 = vrot.lane.b32.xlu0 %v2319, 32
      %v2351 = vpop.permute.xlu0 %2350
      %v2352 = vunpack.c.l.b16 %v1279
      %v2353 = vunpack.c.l.b16 %v1282
      %v2354 = vunpack.c.l.b16 %v1286
      %v2355 = vunpack.c.l.b16 %v1289
      %v2356 = vunpack.c.l.b16 %v1293
      %v2357 = vunpack.c.l.b16 %v1296
      %v2358 = vunpack.c.l.b16 %v1300
      %v2359 = vunpack.c.l.b16 %v1303
      %v2360 = vunpack.c.l.b16 %v1307
      %v2361 = vunpack.c.l.b16 %v1310
      %v2362 = vunpack.c.l.b16 %v1314
      %v2363 = vunpack.c.l.b16 %v1317
      %v2364 = vunpack.c.l.b16 %v1321
      %v2365 = vunpack.c.l.b16 %v1324
      %v2366 = vunpack.c.l.b16 %v1328
      %v2367 = vunpack.c.l.b16 %v1331
      %v2368 = vunpack.c.l.b16 %v1335
      %v2369 = vunpack.c.l.b16 %v1338
      %v2370 = vunpack.c.l.b16 %v1342
      %v2371 = vunpack.c.l.b16 %v1345
      %v2372 = vunpack.c.l.b16 %v1349
      %v2373 = vunpack.c.l.b16 %v1352
      %v2374 = vunpack.c.l.b16 %v1356
      %v2375 = vunpack.c.l.b16 %v1359
      %v2376 = vunpack.c.l.b16 %v1363
      %v2377 = vunpack.c.l.b16 %v1366
      %v2378 = vunpack.c.l.b16 %v1370
      %v2379 = vunpack.c.l.b16 %v1373
      %v2380 = vunpack.c.l.b16 %v1377
      %v2381 = vunpack.c.l.b16 %v1380
      %v2382 = vunpack.c.l.b16 %v1384
      %v2383 = vunpack.c.l.b16 %v1387
      %v2384 = vpack.c.b16 %v2353, %v2352
      %v2385 = vpack.c.b16 %v2355, %v2354
      %v2386 = vpack.c.b16 %v2357, %v2356
      %v2387 = vpack.c.b16 %v2359, %v2358
      %v2388 = vpack.c.b16 %v2361, %v2360
      %v2389 = vpack.c.b16 %v2363, %v2362
      %v2390 = vpack.c.b16 %v2365, %v2364
      %v2391 = vpack.c.b16 %v2367, %v2366
      %v2392 = vpack.c.b16 %v2369, %v2368
      %v2393 = vpack.c.b16 %v2371, %v2370
      %v2394 = vpack.c.b16 %v2373, %v2372
      %v2395 = vpack.c.b16 %v2375, %v2374
      %v2396 = vpack.c.b16 %v2377, %v2376
      %v2397 = vpack.c.b16 %v2379, %v2378
      %v2398 = vpack.c.b16 %v2381, %v2380
      %v2399 = vpack.c.b16 %v2383, %v2382
      %2400 = vrot.lane.b32.xlu0 %v2384, 40
      %v2401 = vpop.permute.xlu0 %2400
      %2402 = vrot.lane.b32.xlu0 %v2385, 40
      %v2403 = vpop.permute.xlu0 %2402
      %2404 = vrot.lane.b32.xlu0 %v2386, 40
      %v2405 = vpop.permute.xlu0 %2404
      %2406 = vrot.lane.b32.xlu0 %v2387, 40
      %v2407 = vpop.permute.xlu0 %2406
      %2408 = vrot.lane.b32.xlu0 %v2388, 40
      %v2409 = vpop.permute.xlu0 %2408
      %2410 = vrot.lane.b32.xlu0 %v2389, 40
      %v2411 = vpop.permute.xlu0 %2410
      %2412 = vrot.lane.b32.xlu0 %v2390, 40
      %v2413 = vpop.permute.xlu0 %2412
      %2414 = vrot.lane.b32.xlu0 %v2391, 40
      %v2415 = vpop.permute.xlu0 %2414
      %2416 = vrot.lane.b32.xlu0 %v2392, 40
      %v2417 = vpop.permute.xlu0 %2416
      %2418 = vrot.lane.b32.xlu0 %v2393, 40
      %v2419 = vpop.permute.xlu0 %2418
      %2420 = vrot.lane.b32.xlu0 %v2394, 40
      %v2421 = vpop.permute.xlu0 %2420
      %2422 = vrot.lane.b32.xlu0 %v2395, 40
      %v2423 = vpop.permute.xlu0 %2422
      %2424 = vrot.lane.b32.xlu0 %v2396, 40
      %v2425 = vpop.permute.xlu0 %2424
      %2426 = vrot.lane.b32.xlu0 %v2397, 40
      %v2427 = vpop.permute.xlu0 %2426
      %2428 = vrot.lane.b32.xlu0 %v2398, 40
      %v2429 = vpop.permute.xlu0 %2428
      %2430 = vrot.lane.b32.xlu0 %v2399, 40
      %v2431 = vpop.permute.xlu0 %2430
      %v2432 = vunpack.c.l.b16 %v1392
      %v2433 = vunpack.c.l.b16 %v1393
      %v2434 = vunpack.c.l.b16 %v1395
      %v2435 = vunpack.c.l.b16 %v1396
      %v2436 = vunpack.c.l.b16 %v1398
      %v2437 = vunpack.c.l.b16 %v1399
      %v2438 = vunpack.c.l.b16 %v1401
      %v2439 = vunpack.c.l.b16 %v1402
      %v2440 = vunpack.c.l.b16 %v1404
      %v2441 = vunpack.c.l.b16 %v1405
      %v2442 = vunpack.c.l.b16 %v1407
      %v2443 = vunpack.c.l.b16 %v1408
      %v2444 = vunpack.c.l.b16 %v1410
      %v2445 = vunpack.c.l.b16 %v1411
      %v2446 = vunpack.c.l.b16 %v1413
      %v2447 = vunpack.c.l.b16 %v1414
      %v2448 = vunpack.c.l.b16 %v1416
      %v2449 = vunpack.c.l.b16 %v1417
      %v2450 = vunpack.c.l.b16 %v1419
      %v2451 = vunpack.c.l.b16 %v1420
      %v2452 = vunpack.c.l.b16 %v1422
      %v2453 = vunpack.c.l.b16 %v1423
      %v2454 = vunpack.c.l.b16 %v1425
      %v2455 = vunpack.c.l.b16 %v1426
      %v2456 = vunpack.c.l.b16 %v1428
      %v2457 = vunpack.c.l.b16 %v1429
      %v2458 = vunpack.c.l.b16 %v1431
      %v2459 = vunpack.c.l.b16 %v1432
      %v2460 = vunpack.c.l.b16 %v1434
      %v2461 = vunpack.c.l.b16 %v1435
      %v2462 = vunpack.c.l.b16 %v1437
      %v2463 = vunpack.c.l.b16 %v1438
      %v2464 = vpack.c.b16 %v2433, %v2432
      %v2465 = vpack.c.b16 %v2435, %v2434
      %v2466 = vpack.c.b16 %v2437, %v2436
      %v2467 = vpack.c.b16 %v2439, %v2438
      %v2468 = vpack.c.b16 %v2441, %v2440
      %v2469 = vpack.c.b16 %v2443, %v2442
      %v2470 = vpack.c.b16 %v2445, %v2444
      %v2471 = vpack.c.b16 %v2447, %v2446
      %v2472 = vpack.c.b16 %v2449, %v2448
      %v2473 = vpack.c.b16 %v2451, %v2450
      %v2474 = vpack.c.b16 %v2453, %v2452
      %v2475 = vpack.c.b16 %v2455, %v2454
      %v2476 = vpack.c.b16 %v2457, %v2456
      %v2477 = vpack.c.b16 %v2459, %v2458
      %v2478 = vpack.c.b16 %v2461, %v2460
      %v2479 = vpack.c.b16 %v2463, %v2462
      %2480 = vrot.lane.b32.xlu0 %v2464, 48
      %v2481 = vpop.permute.xlu0 %2480
      %2482 = vrot.lane.b32.xlu0 %v2465, 48
      %v2483 = vpop.permute.xlu0 %2482
      %2484 = vrot.lane.b32.xlu0 %v2466, 48
      %v2485 = vpop.permute.xlu0 %2484
      %2486 = vrot.lane.b32.xlu0 %v2467, 48
      %v2487 = vpop.permute.xlu0 %2486
      %2488 = vrot.lane.b32.xlu0 %v2468, 48
      %v2489 = vpop.permute.xlu0 %2488
      %2490 = vrot.lane.b32.xlu0 %v2469, 48
      %v2491 = vpop.permute.xlu0 %2490
      %2492 = vrot.lane.b32.xlu0 %v2470, 48
      %v2493 = vpop.permute.xlu0 %2492
      %2494 = vrot.lane.b32.xlu0 %v2471, 48
      %v2495 = vpop.permute.xlu0 %2494
      %2496 = vrot.lane.b32.xlu0 %v2472, 48
      %v2497 = vpop.permute.xlu0 %2496
      %2498 = vrot.lane.b32.xlu0 %v2473, 48
      %v2499 = vpop.permute.xlu0 %2498
      %2500 = vrot.lane.b32.xlu0 %v2474, 48
      %v2501 = vpop.permute.xlu0 %2500
      %2502 = vrot.lane.b32.xlu0 %v2475, 48
      %v2503 = vpop.permute.xlu0 %2502
      %2504 = vrot.lane.b32.xlu0 %v2476, 48
      %v2505 = vpop.permute.xlu0 %2504
      %2506 = vrot.lane.b32.xlu0 %v2477, 48
      %v2507 = vpop.permute.xlu0 %2506
      %2508 = vrot.lane.b32.xlu0 %v2478, 48
      %v2509 = vpop.permute.xlu0 %2508
      %2510 = vrot.lane.b32.xlu0 %v2479, 48
      %v2511 = vpop.permute.xlu0 %2510
      %v2512 = vunpack.c.l.b16 %v1453
      %v2513 = vunpack.c.l.b16 %v1463
      %v2514 = vunpack.c.l.b16 %v1477
      %v2515 = vunpack.c.l.b16 %v1487
      %v2516 = vunpack.c.l.b16 %v1501
      %v2517 = vunpack.c.l.b16 %v1511
      %v2518 = vunpack.c.l.b16 %v1525
      %v2519 = vunpack.c.l.b16 %v1535
      %v2520 = vunpack.c.l.b16 %v1549
      %v2521 = vunpack.c.l.b16 %v1559
      %v2522 = vunpack.c.l.b16 %v1573
      %v2523 = vunpack.c.l.b16 %v1583
      %v2524 = vunpack.c.l.b16 %v1597
      %v2525 = vunpack.c.l.b16 %v1607
      %v2526 = vunpack.c.l.b16 %v1621
      %v2527 = vunpack.c.l.b16 %v1631
      %v2528 = vunpack.c.l.b16 %v1645
      %v2529 = vunpack.c.l.b16 %v1655
      %v2530 = vunpack.c.l.b16 %v1669
      %v2531 = vunpack.c.l.b16 %v1679
      %v2532 = vunpack.c.l.b16 %v1693
      %v2533 = vunpack.c.l.b16 %v1703
      %v2534 = vunpack.c.l.b16 %v1717
      %v2535 = vunpack.c.l.b16 %v1727
      %v2536 = vunpack.c.l.b16 %v1741
      %v2537 = vunpack.c.l.b16 %v1751
      %v2538 = vunpack.c.l.b16 %v1765
      %v2539 = vunpack.c.l.b16 %v1775
      %v2540 = vunpack.c.l.b16 %v1789
      %v2541 = vunpack.c.l.b16 %v1799
      %v2542 = vunpack.c.l.b16 %v1813
      %v2543 = vunpack.c.l.b16 %v1823
      %v2544 = vpack.c.b16 %v2513, %v2512
      %v2545 = vpack.c.b16 %v2515, %v2514
      %v2546 = vpack.c.b16 %v2517, %v2516
      %v2547 = vpack.c.b16 %v2519, %v2518
      %v2548 = vpack.c.b16 %v2521, %v2520
      %v2549 = vpack.c.b16 %v2523, %v2522
      %v2550 = vpack.c.b16 %v2525, %v2524
      %v2551 = vpack.c.b16 %v2527, %v2526
      %v2552 = vpack.c.b16 %v2529, %v2528
      %v2553 = vpack.c.b16 %v2531, %v2530
      %v2554 = vpack.c.b16 %v2533, %v2532
      %v2555 = vpack.c.b16 %v2535, %v2534
      %v2556 = vpack.c.b16 %v2537, %v2536
      %v2557 = vpack.c.b16 %v2539, %v2538
      %v2558 = vpack.c.b16 %v2541, %v2540
      %v2559 = vpack.c.b16 %v2543, %v2542
      %2560 = vrot.lane.b32.xlu0 %v2544, 56
      %v2561 = vpop.permute.xlu0 %2560
      %2562 = vrot.lane.b32.xlu0 %v2545, 56
      %v2563 = vpop.permute.xlu0 %2562
      %2564 = vrot.lane.b32.xlu0 %v2546, 56
      %v2565 = vpop.permute.xlu0 %2564
      %2566 = vrot.lane.b32.xlu0 %v2547, 56
      %v2567 = vpop.permute.xlu0 %2566
      %2568 = vrot.lane.b32.xlu0 %v2548, 56
      %v2569 = vpop.permute.xlu0 %2568
      %2570 = vrot.lane.b32.xlu0 %v2549, 56
      %v2571 = vpop.permute.xlu0 %2570
      %2572 = vrot.lane.b32.xlu0 %v2550, 56
      %v2573 = vpop.permute.xlu0 %2572
      %2574 = vrot.lane.b32.xlu0 %v2551, 56
      %v2575 = vpop.permute.xlu0 %2574
      %2576 = vrot.lane.b32.xlu0 %v2552, 56
      %v2577 = vpop.permute.xlu0 %2576
      %2578 = vrot.lane.b32.xlu0 %v2553, 56
      %v2579 = vpop.permute.xlu0 %2578
      %2580 = vrot.lane.b32.xlu0 %v2554, 56
      %v2581 = vpop.permute.xlu0 %2580
      %2582 = vrot.lane.b32.xlu0 %v2555, 56
      %v2583 = vpop.permute.xlu0 %2582
      %2584 = vrot.lane.b32.xlu0 %v2556, 56
      %v2585 = vpop.permute.xlu0 %2584
      %2586 = vrot.lane.b32.xlu0 %v2557, 56
      %v2587 = vpop.permute.xlu0 %2586
      %2588 = vrot.lane.b32.xlu0 %v2558, 56
      %v2589 = vpop.permute.xlu0 %2588
      %2590 = vrot.lane.b32.xlu0 %v2559, 56
      %v2591 = vpop.permute.xlu0 %2590
      %v2592 = vunpack.c.l.b16 %v1875
      %v2593 = vunpack.c.l.b16 %v1878
      %v2594 = vunpack.c.l.b16 %v1882
      %v2595 = vunpack.c.l.b16 %v1885
      %v2596 = vunpack.c.l.b16 %v1889
      %v2597 = vunpack.c.l.b16 %v1892
      %v2598 = vunpack.c.l.b16 %v1896
      %v2599 = vunpack.c.l.b16 %v1899
      %v2600 = vunpack.c.l.b16 %v1903
      %v2601 = vunpack.c.l.b16 %v1906
      %v2602 = vunpack.c.l.b16 %v1910
      %v2603 = vunpack.c.l.b16 %v1913
      %v2604 = vunpack.c.l.b16 %v1917
      %v2605 = vunpack.c.l.b16 %v1920
      %v2606 = vunpack.c.l.b16 %v1924
      %v2607 = vunpack.c.l.b16 %v1927
      %v2608 = vunpack.c.l.b16 %v1931
      %v2609 = vunpack.c.l.b16 %v1934
      %v2610 = vunpack.c.l.b16 %v1938
      %v2611 = vunpack.c.l.b16 %v1941
      %v2612 = vunpack.c.l.b16 %v1945
      %v2613 = vunpack.c.l.b16 %v1948
      %v2614 = vunpack.c.l.b16 %v1952
      %v2615 = vunpack.c.l.b16 %v1955
      %v2616 = vunpack.c.l.b16 %v1959
      %v2617 = vunpack.c.l.b16 %v1962
      %v2618 = vunpack.c.l.b16 %v1966
      %v2619 = vunpack.c.l.b16 %v1969
      %v2620 = vunpack.c.l.b16 %v1973
      %v2621 = vunpack.c.l.b16 %v1976
      %v2622 = vunpack.c.l.b16 %v1980
      %v2623 = vunpack.c.l.b16 %v1983
      %v2624 = vpack.c.b16 %v2593, %v2592
      %v2625 = vpack.c.b16 %v2595, %v2594
      %v2626 = vpack.c.b16 %v2597, %v2596
      %v2627 = vpack.c.b16 %v2599, %v2598
      %v2628 = vpack.c.b16 %v2601, %v2600
      %v2629 = vpack.c.b16 %v2603, %v2602
      %v2630 = vpack.c.b16 %v2605, %v2604
      %v2631 = vpack.c.b16 %v2607, %v2606
      %v2632 = vpack.c.b16 %v2609, %v2608
      %v2633 = vpack.c.b16 %v2611, %v2610
      %v2634 = vpack.c.b16 %v2613, %v2612
      %v2635 = vpack.c.b16 %v2615, %v2614
      %v2636 = vpack.c.b16 %v2617, %v2616
      %v2637 = vpack.c.b16 %v2619, %v2618
      %v2638 = vpack.c.b16 %v2621, %v2620
      %v2639 = vpack.c.b16 %v2623, %v2622
      %2640 = vrot.lane.b32.xlu0 %v2624, 64
      %v2641 = vpop.permute.xlu0 %2640
      %2642 = vrot.lane.b32.xlu0 %v2625, 64
      %v2643 = vpop.permute.xlu0 %2642
      %2644 = vrot.lane.b32.xlu0 %v2626, 64
      %v2645 = vpop.permute.xlu0 %2644
      %2646 = vrot.lane.b32.xlu0 %v2627, 64
      %v2647 = vpop.permute.xlu0 %2646
      %2648 = vrot.lane.b32.xlu0 %v2628, 64
      %v2649 = vpop.permute.xlu0 %2648
      %2650 = vrot.lane.b32.xlu0 %v2629, 64
      %v2651 = vpop.permute.xlu0 %2650
      %2652 = vrot.lane.b32.xlu0 %v2630, 64
      %v2653 = vpop.permute.xlu0 %2652
      %2654 = vrot.lane.b32.xlu0 %v2631, 64
      %v2655 = vpop.permute.xlu0 %2654
      %2656 = vrot.lane.b32.xlu0 %v2632, 64
      %v2657 = vpop.permute.xlu0 %2656
      %2658 = vrot.lane.b32.xlu0 %v2633, 64
      %v2659 = vpop.permute.xlu0 %2658
      %2660 = vrot.lane.b32.xlu0 %v2634, 64
      %v2661 = vpop.permute.xlu0 %2660
      %2662 = vrot.lane.b32.xlu0 %v2635, 64
      %v2663 = vpop.permute.xlu0 %2662
      %2664 = vrot.lane.b32.xlu0 %v2636, 64
      %v2665 = vpop.permute.xlu0 %2664
      %2666 = vrot.lane.b32.xlu0 %v2637, 64
      %v2667 = vpop.permute.xlu0 %2666
      %2668 = vrot.lane.b32.xlu0 %v2638, 64
      %v2669 = vpop.permute.xlu0 %2668
      %2670 = vrot.lane.b32.xlu0 %v2639, 64
      %v2671 = vpop.permute.xlu0 %2670
      %vm2672 = vcmask 64512
      %v2675 = vsel %vm2672, %v2016, %v2081
      %v2678 = vsel %vm2672, %v2017, %v2083
      %v2681 = vsel %vm2672, %v2018, %v2085
      %v2684 = vsel %vm2672, %v2019, %v2087
      %v2687 = vsel %vm2672, %v2020, %v2089
      %v2690 = vsel %vm2672, %v2021, %v2091
      %v2693 = vsel %vm2672, %v2022, %v2093
      %v2696 = vsel %vm2672, %v2023, %v2095
      %v2699 = vsel %vm2672, %v2024, %v2097
      %v2702 = vsel %vm2672, %v2025, %v2099
      %v2705 = vsel %vm2672, %v2026, %v2101
      %v2708 = vsel %vm2672, %v2027, %v2103
      %v2711 = vsel %vm2672, %v2028, %v2105
      %v2714 = vsel %vm2672, %v2029, %v2107
      %v2717 = vsel %vm2672, %v2030, %v2109
      %v2720 = vsel %vm2672, %v2031, %v2111
      %vm2721 = vcmask 130048
      %v2723 = vsel %vm2721, %v2675, %v2161
      %v2725 = vsel %vm2721, %v2678, %v2163
      %v2727 = vsel %vm2721, %v2681, %v2165
      %v2729 = vsel %vm2721, %v2684, %v2167
      %v2731 = vsel %vm2721, %v2687, %v2169
      %v2733 = vsel %vm2721, %v2690, %v2171
      %v2735 = vsel %vm2721, %v2693, %v2173
      %v2737 = vsel %vm2721, %v2696, %v2175
      %v2739 = vsel %vm2721, %v2699, %v2177
      %v2741 = vsel %vm2721, %v2702, %v2179
      %v2743 = vsel %vm2721, %v2705, %v2181
      %v2745 = vsel %vm2721, %v2708, %v2183
      %v2747 = vsel %vm2721, %v2711, %v2185
      %v2749 = vsel %vm2721, %v2714, %v2187
      %v2751 = vsel %vm2721, %v2717, %v2189
      %v2753 = vsel %vm2721, %v2720, %v2191
      %vm2754 = vcmask 195584
      %v2756 = vsel %vm2754, %v2723, %v2241
      %v2758 = vsel %vm2754, %v2725, %v2243
      %v2760 = vsel %vm2754, %v2727, %v2245
      %v2762 = vsel %vm2754, %v2729, %v2247
      %v2764 = vsel %vm2754, %v2731, %v2249
      %v2766 = vsel %vm2754, %v2733, %v2251
      %v2768 = vsel %vm2754, %v2735, %v2253
      %v2770 = vsel %vm2754, %v2737, %v2255
      %v2772 = vsel %vm2754, %v2739, %v2257
      %v2774 = vsel %vm2754, %v2741, %v2259
      %v2776 = vsel %vm2754, %v2743, %v2261
      %v2778 = vsel %vm2754, %v2745, %v2263
      %v2780 = vsel %vm2754, %v2747, %v2265
      %v2782 = vsel %vm2754, %v2749, %v2267
      %v2784 = vsel %vm2754, %v2751, %v2269
      %v2786 = vsel %vm2754, %v2753, %v2271
      %vm2787 = vcmask 261120
      %v2789 = vsel %vm2787, %v2756, %v2321
      %v2791 = vsel %vm2787, %v2758, %v2323
      %v2793 = vsel %vm2787, %v2760, %v2325
      %v2795 = vsel %vm2787, %v2762, %v2327
      %v2797 = vsel %vm2787, %v2764, %v2329
      %v2799 = vsel %vm2787, %v2766, %v2331
      %v2801 = vsel %vm2787, %v2768, %v2333
      %v2803 = vsel %vm2787, %v2770, %v2335
      %v2805 = vsel %vm2787, %v2772, %v2337
      %v2807 = vsel %vm2787, %v2774, %v2339
      %v2809 = vsel %vm2787, %v2776, %v2341
      %v2811 = vsel %vm2787, %v2778, %v2343
      %v2813 = vsel %vm2787, %v2780, %v2345
      %v2815 = vsel %vm2787, %v2782, %v2347
      %v2817 = vsel %vm2787, %v2784, %v2349
      %v2819 = vsel %vm2787, %v2786, %v2351
      %vm2820 = vcmask 326656
      %v2822 = vsel %vm2820, %v2789, %v2401
      %v2824 = vsel %vm2820, %v2791, %v2403
      %v2826 = vsel %vm2820, %v2793, %v2405
      %v2828 = vsel %vm2820, %v2795, %v2407
      %v2830 = vsel %vm2820, %v2797, %v2409
      %v2832 = vsel %vm2820, %v2799, %v2411
      %v2834 = vsel %vm2820, %v2801, %v2413
      %v2836 = vsel %vm2820, %v2803, %v2415
      %v2838 = vsel %vm2820, %v2805, %v2417
      %v2840 = vsel %vm2820, %v2807, %v2419
      %v2842 = vsel %vm2820, %v2809, %v2421
      %v2844 = vsel %vm2820, %v2811, %v2423
      %v2846 = vsel %vm2820, %v2813, %v2425
      %v2848 = vsel %vm2820, %v2815, %v2427
      %v2850 = vsel %vm2820, %v2817, %v2429
      %v2852 = vsel %vm2820, %v2819, %v2431
      %vm2853 = vcmask 392192
      %v2855 = vsel %vm2853, %v2822, %v2481
      %v2857 = vsel %vm2853, %v2824, %v2483
      %v2859 = vsel %vm2853, %v2826, %v2485
      %v2861 = vsel %vm2853, %v2828, %v2487
      %v2863 = vsel %vm2853, %v2830, %v2489
      %v2865 = vsel %vm2853, %v2832, %v2491
      %v2867 = vsel %vm2853, %v2834, %v2493
      %v2869 = vsel %vm2853, %v2836, %v2495
      %v2871 = vsel %vm2853, %v2838, %v2497
      %v2873 = vsel %vm2853, %v2840, %v2499
      %v2875 = vsel %vm2853, %v2842, %v2501
      %v2877 = vsel %vm2853, %v2844, %v2503
      %v2879 = vsel %vm2853, %v2846, %v2505
      %v2881 = vsel %vm2853, %v2848, %v2507
      %v2883 = vsel %vm2853, %v2850, %v2509
      %v2885 = vsel %vm2853, %v2852, %v2511
      %vm2886 = vcmask 457728
      %v2888 = vsel %vm2886, %v2855, %v2561
      %v2890 = vsel %vm2886, %v2857, %v2563
      %v2892 = vsel %vm2886, %v2859, %v2565
      %v2894 = vsel %vm2886, %v2861, %v2567
      %v2896 = vsel %vm2886, %v2863, %v2569
      %v2898 = vsel %vm2886, %v2865, %v2571
      %v2900 = vsel %vm2886, %v2867, %v2573
      %v2902 = vsel %vm2886, %v2869, %v2575
      %v2904 = vsel %vm2886, %v2871, %v2577
      %v2906 = vsel %vm2886, %v2873, %v2579
      %v2908 = vsel %vm2886, %v2875, %v2581
      %v2910 = vsel %vm2886, %v2877, %v2583
      %v2912 = vsel %vm2886, %v2879, %v2585
      %v2914 = vsel %vm2886, %v2881, %v2587
      %v2916 = vsel %vm2886, %v2883, %v2589
      %v2918 = vsel %vm2886, %v2885, %v2591
      %vm2919 = vcmask 523264
      %v2921 = vsel %vm2919, %v2888, %v2641
      %v2923 = vsel %vm2919, %v2890, %v2643
      %v2925 = vsel %vm2919, %v2892, %v2645
      %v2927 = vsel %vm2919, %v2894, %v2647
      %v2929 = vsel %vm2919, %v2896, %v2649
      %v2931 = vsel %vm2919, %v2898, %v2651
      %v2933 = vsel %vm2919, %v2900, %v2653
      %v2935 = vsel %vm2919, %v2902, %v2655
      %v2937 = vsel %vm2919, %v2904, %v2657
      %v2939 = vsel %vm2919, %v2906, %v2659
      %v2941 = vsel %vm2919, %v2908, %v2661
      %v2943 = vsel %vm2919, %v2910, %v2663
      %v2945 = vsel %vm2919, %v2912, %v2665
      %v2947 = vsel %vm2919, %v2914, %v2667
      %v2949 = vsel %vm2919, %v2916, %v2669
      %v2951 = vsel %vm2919, %v2918, %v2671
      %vm2952 = vcmask 588800
      %v2954 = vsel %vm2952, %v2921, 0
      %v2956 = vsel %vm2952, %v2923, 0
      %v2958 = vsel %vm2952, %v2925, 0
      %v2960 = vsel %vm2952, %v2927, 0
      %v2962 = vsel %vm2952, %v2929, 0
      %v2964 = vsel %vm2952, %v2931, 0
      %v2966 = vsel %vm2952, %v2933, 0
      %v2968 = vsel %vm2952, %v2935, 0
      %v2970 = vsel %vm2952, %v2937, 0
      %v2972 = vsel %vm2952, %v2939, 0
      %v2974 = vsel %vm2952, %v2941, 0
      %v2976 = vsel %vm2952, %v2943, 0
      %v2978 = vsel %vm2952, %v2945, 0
      %v2980 = vsel %vm2952, %v2947, 0
      %v2982 = vsel %vm2952, %v2949, 0
      %v2984 = vsel %vm2952, %v2951, 0
      %v2986 = vld [vmem:[%s177] sm:$0xf]
      %v2987 = vld [vmem:[%s177 + $0x4] sm:$0xf]
      %v2988 = vld [vmem:[%s177 + $0x8] sm:$0xf]
      %v2989 = vld [vmem:[%s177 + $0xc] sm:$0xf]
      %v2990 = vld [vmem:[%s177 + $0x10] sm:$0xf]
      %v2991 = vld [vmem:[%s177 + $0x14] sm:$0xf]
      %v2992 = vld [vmem:[%s177 + $0x18] sm:$0xf]
      %v2993 = vld [vmem:[%s177 + $0x1c] sm:$0xf]
      %v2994 = vld [vmem:[%s177 + $0x20] sm:$0xf]
      %v2995 = vld [vmem:[%s177 + $0x24] sm:$0xf]
      %v2996 = vld [vmem:[%s177 + $0x28] sm:$0xf]
      %v2997 = vld [vmem:[%s177 + $0x2c] sm:$0xf]
      %v2998 = vld [vmem:[%s177 + $0x30] sm:$0xf]
      %v2999 = vld [vmem:[%s177 + $0x34] sm:$0xf]
      %v3000 = vld [vmem:[%s177 + $0x38] sm:$0xf]
      %v3001 = vld [vmem:[%s177 + $0x3c] sm:$0xf]
      %v3018 = vunpack.c.l.b16 %v2986
      %v3019 = vunpack.c.l.b16 %v2987
      %v3020 = vunpack.c.l.b16 %v2988
      %v3021 = vunpack.c.l.b16 %v2989
      %v3022 = vunpack.c.l.b16 %v2990
      %v3023 = vunpack.c.l.b16 %v2991
      %v3024 = vunpack.c.l.b16 %v2992
      %v3025 = vunpack.c.l.b16 %v2993
      %v3026 = vunpack.c.l.b16 %v2994
      %v3027 = vunpack.c.l.b16 %v2995
      %v3028 = vunpack.c.l.b16 %v2996
      %v3029 = vunpack.c.l.b16 %v2997
      %v3030 = vunpack.c.l.b16 %v2998
      %v3031 = vunpack.c.l.b16 %v2999
      %v3032 = vunpack.c.l.b16 %v3000
      %v3033 = vunpack.c.l.b16 %v3001
      %v3034 = vpack.c.b16 %v3019, %v3018
      %v3035 = vpack.c.b16 %v3021, %v3020
      %v3036 = vpack.c.b16 %v3023, %v3022
      %v3037 = vpack.c.b16 %v3025, %v3024
      %v3038 = vpack.c.b16 %v3027, %v3026
      %v3039 = vpack.c.b16 %v3029, %v3028
      %v3040 = vpack.c.b16 %v3031, %v3030
      %v3041 = vpack.c.b16 %v3033, %v3032
      %3050 = vmatprep.subr.bf16.mxu0 0
      %3051 = vmatpush1.bf16.msra.mxu0 %v3034
      %3052 = vmatprep.subr.bf16.mxu0 0
      %3053 = vmatpush1.bf16.msra.mxu0 %v3035
      %3054 = vmatprep.subr.bf16.mxu0 0
      %3055 = vmatpush1.bf16.msra.mxu0 %v3036
      %3056 = vmatprep.subr.bf16.mxu0 0
      %3057 = vmatpush1.bf16.msra.mxu0 %v3037
      %3058 = vmatprep.subr.bf16.mxu0 0
      %3059 = vmatpush1.bf16.msra.mxu0 %v3038
      %3060 = vmatprep.subr.bf16.mxu0 0
      %3061 = vmatpush1.bf16.msra.mxu0 %v3039
      %3062 = vmatprep.subr.bf16.mxu0 0
      %3063 = vmatpush1.bf16.msra.mxu0 %v3040
      %3064 = vmatprep.subr.bf16.mxu0 0
      %3065 = vmatpush1.bf16.msra.mxu0 %v3041
      %3066 = vmatprep.subr.bf16.mxu0 0
      %3067 = vmatpush1.bf16.msra.mxu0 0
      %3068 = vmatprep.subr.bf16.mxu0 0
      %3069 = vmatpush1.bf16.msra.mxu0 0
      %3070 = vmatprep.subr.bf16.mxu0 0
      %3071 = vmatpush1.bf16.msra.mxu0 0
      %3072 = vmatprep.subr.bf16.mxu0 0
      %3073 = vmatpush1.bf16.msra.mxu0 0
      %3074 = vmatprep.subr.bf16.mxu0 0
      %3075 = vmatpush1.bf16.msra.mxu0 0
      %3076 = vmatprep.subr.bf16.mxu0 0
      %3077 = vmatpush1.bf16.msra.mxu0 0
      %3078 = vmatprep.subr.bf16.mxu0 0
      %3079 = vmatpush1.bf16.msra.mxu0 0
      %3080 = vmatprep.subr.bf16.mxu0 0
      %3081 = vmatpush1.bf16.msra.mxu0 0
      %3082 = vmatprep.mubr.bf16.mxu0 0
      %3083 = vmatmul.mubr.bf16.gmra.mrb[0].mxu0 %v2954
      %v3084 = vpop.f32.mrb[0].mxu0
      %v3085 = vadd.f32 0.0, %v3084
      %v3086 = vpop.f32.mrb[0].mxu0
      %v3087 = vpop.f32.mrb[0].mxu0
      %v3088 = vadd.f32 0.0, %v3087
      %v3089 = vpop.f32.mrb[0].mxu0
      %3090 = vmatprep.mubr.bf16.mxu0 0
      %3091 = vmatmul.mubr.bf16.gmra.mrb[0].mxu0 %v2956
      %v3092 = vpop.f32.mrb[0].mxu0
      %v3093 = vadd.f32 0.0, %v3092
      %v3094 = vpop.f32.mrb[0].mxu0
      %v3095 = vpop.f32.mrb[0].mxu0
      %v3096 = vadd.f32 0.0, %v3095
      %v3097 = vpop.f32.mrb[0].mxu0
      %3098 = vmatprep.mubr.bf16.mxu0 0
      %3099 = vmatmul.mubr.bf16.gmra.mrb[0].mxu0 %v2958
      %v3100 = vpop.f32.mrb[0].mxu0
      %v3101 = vadd.f32 0.0, %v3100
      %v3102 = vpop.f32.mrb[0].mxu0
      %v3103 = vpop.f32.mrb[0].mxu0
      %v3104 = vadd.f32 0.0, %v3103
      %v3105 = vpop.f32.mrb[0].mxu0
      %3106 = vmatprep.mubr.bf16.mxu0 0
      %3107 = vmatmul.mubr.bf16.gmra.mrb[0].mxu0 %v2960
      %v3108 = vpop.f32.mrb[0].mxu0
      %v3109 = vadd.f32 0.0, %v3108
      %v3110 = vpop.f32.mrb[0].mxu0
      %v3111 = vpop.f32.mrb[0].mxu0
      %v3112 = vadd.f32 0.0, %v3111
      %v3113 = vpop.f32.mrb[0].mxu0
      %3114 = vmatprep.mubr.bf16.mxu0 0
      %3115 = vmatmul.mubr.bf16.gmra.mrb[0].mxu0 %v2962
      %v3116 = vpop.f32.mrb[0].mxu0
      %v3117 = vadd.f32 0.0, %v3116
      %v3118 = vpop.f32.mrb[0].mxu0
      %v3119 = vpop.f32.mrb[0].mxu0
      %v3120 = vadd.f32 0.0, %v3119
      %v3121 = vpop.f32.mrb[0].mxu0
      %3122 = vmatprep.mubr.bf16.mxu0 0
      %3123 = vmatmul.mubr.bf16.gmra.mrb[0].mxu0 %v2964
      %v3124 = vpop.f32.mrb[0].mxu0
      %v3125 = vadd.f32 0.0, %v3124
      %v3126 = vpop.f32.mrb[0].mxu0
      %v3127 = vpop.f32.mrb[0].mxu0
      %v3128 = vadd.f32 0.0, %v3127
      %v3129 = vpop.f32.mrb[0].mxu0
      %3130 = vmatprep.mubr.bf16.mxu0 0
      %3131 = vmatmul.mubr.bf16.gmra.mrb[0].mxu0 %v2966
      %v3132 = vpop.f32.mrb[0].mxu0
      %v3133 = vadd.f32 0.0, %v3132
      %v3134 = vpop.f32.mrb[0].mxu0
      %v3135 = vpop.f32.mrb[0].mxu0
      %v3136 = vadd.f32 0.0, %v3135
      %v3137 = vpop.f32.mrb[0].mxu0
      %3138 = vmatprep.mubr.bf16.mxu0 0
      %3139 = vmatmul.mubr.bf16.gmra.mrb[0].mxu0 %v2968
      %v3140 = vpop.f32.mrb[0].mxu0
      %v3141 = vadd.f32 0.0, %v3140
      %v3142 = vpop.f32.mrb[0].mxu0
      %v3143 = vpop.f32.mrb[0].mxu0
      %v3144 = vadd.f32 0.0, %v3143
      %v3145 = vpop.f32.mrb[0].mxu0
      %3146 = vmatprep.mubr.bf16.mxu0 0
      %3147 = vmatmul.mubr.bf16.gmra.mrb[0].mxu0 %v2970
      %v3148 = vpop.f32.mrb[0].mxu0
      %v3149 = vadd.f32 0.0, %v3148
      %v3150 = vpop.f32.mrb[0].mxu0
      %v3151 = vpop.f32.mrb[0].mxu0
      %v3152 = vadd.f32 0.0, %v3151
      %v3153 = vpop.f32.mrb[0].mxu0
      %3154 = vmatprep.mubr.bf16.mxu0 0
      %3155 = vmatmul.mubr.bf16.gmra.mrb[0].mxu0 %v2972
      %v3156 = vpop.f32.mrb[0].mxu0
      %v3157 = vadd.f32 0.0, %v3156
      %v3158 = vpop.f32.mrb[0].mxu0
      %v3159 = vpop.f32.mrb[0].mxu0
      %v3160 = vadd.f32 0.0, %v3159
      %v3161 = vpop.f32.mrb[0].mxu0
      %3162 = vmatprep.mubr.bf16.mxu0 0
      %3163 = vmatmul.mubr.bf16.gmra.mrb[0].mxu0 %v2974
      %v3164 = vpop.f32.mrb[0].mxu0
      %v3165 = vadd.f32 0.0, %v3164
      %v3166 = vpop.f32.mrb[0].mxu0
      %v3167 = vpop.f32.mrb[0].mxu0
      %v3168 = vadd.f32 0.0, %v3167
      %v3169 = vpop.f32.mrb[0].mxu0
      %3170 = vmatprep.mubr.bf16.mxu0 0
      %3171 = vmatmul.mubr.bf16.gmra.mrb[0].mxu0 %v2976
      %v3172 = vpop.f32.mrb[0].mxu0
      %v3173 = vadd.f32 0.0, %v3172
      %v3174 = vpop.f32.mrb[0].mxu0
      %v3175 = vpop.f32.mrb[0].mxu0
      %v3176 = vadd.f32 0.0, %v3175
      %v3177 = vpop.f32.mrb[0].mxu0
      %3178 = vmatprep.mubr.bf16.mxu0 0
      %3179 = vmatmul.mubr.bf16.gmra.mrb[0].mxu0 %v2978
      %v3180 = vpop.f32.mrb[0].mxu0
      %v3181 = vadd.f32 0.0, %v3180
      %v3182 = vpop.f32.mrb[0].mxu0
      %v3183 = vpop.f32.mrb[0].mxu0
      %v3184 = vadd.f32 0.0, %v3183
      %v3185 = vpop.f32.mrb[0].mxu0
      %3186 = vmatprep.mubr.bf16.mxu0 0
      %3187 = vmatmul.mubr.bf16.gmra.mrb[0].mxu0 %v2980
      %v3188 = vpop.f32.mrb[0].mxu0
      %v3189 = vadd.f32 0.0, %v3188
      %v3190 = vpop.f32.mrb[0].mxu0
      %v3191 = vpop.f32.mrb[0].mxu0
      %v3192 = vadd.f32 0.0, %v3191
      %v3193 = vpop.f32.mrb[0].mxu0
      %3194 = vmatprep.mubr.bf16.mxu0 0
      %3195 = vmatmul.mubr.bf16.gmra.mrb[0].mxu0 %v2982
      %v3196 = vpop.f32.mrb[0].mxu0
      %v3197 = vadd.f32 0.0, %v3196
      %v3198 = vpop.f32.mrb[0].mxu0
      %v3199 = vpop.f32.mrb[0].mxu0
      %v3200 = vadd.f32 0.0, %v3199
      %v3201 = vpop.f32.mrb[0].mxu0
      %3202 = vmatprep.mubr.bf16.mxu0 0
      %3203 = vmatmul.mubr.bf16.gmra.mrb[0].mxu0 %v2984
      %v3204 = vpop.f32.mrb[0].mxu0
      %v3205 = vadd.f32 0.0, %v3204
      %v3206 = vpop.f32.mrb[0].mxu0
      %v3207 = vpop.f32.mrb[0].mxu0
      %v3208 = vadd.f32 0.0, %v3207
      %v3209 = vpop.f32.mrb[0].mxu0
      %3210 = vdwg.mxu0
      %v3211 = vpack.c.bf16 %v3088, %v3085
      %v3212 = vpack.c.bf16 %v3096, %v3093
      %v3213 = vpack.c.bf16 %v3104, %v3101
      %v3214 = vpack.c.bf16 %v3112, %v3109
      %v3215 = vpack.c.bf16 %v3120, %v3117
      %v3216 = vpack.c.bf16 %v3128, %v3125
      %v3217 = vpack.c.bf16 %v3136, %v3133
      %v3218 = vpack.c.bf16 %v3144, %v3141
      %v3219 = vpack.c.bf16 %v3152, %v3149
      %v3220 = vpack.c.bf16 %v3160, %v3157
      %v3221 = vpack.c.bf16 %v3168, %v3165
      %v3222 = vpack.c.bf16 %v3176, %v3173
      %v3223 = vpack.c.bf16 %v3184, %v3181
      %v3224 = vpack.c.bf16 %v3192, %v3189
      %v3225 = vpack.c.bf16 %v3200, %v3197
      %v3226 = vpack.c.bf16 %v3208, %v3205
      %v3243 = vunpack.c.l.b16 %v3211
      %v3244 = vunpack.c.h.b16 %v3211
      %v3245 = vunpack.c.l.b16 %v3212
      %v3246 = vunpack.c.h.b16 %v3212
      %v3247 = vunpack.c.l.b16 %v3213
      %v3248 = vunpack.c.h.b16 %v3213
      %v3249 = vunpack.c.l.b16 %v3214
      %v3250 = vunpack.c.h.b16 %v3214
      %v3251 = vunpack.c.l.b16 %v3215
      %v3252 = vunpack.c.h.b16 %v3215
      %v3253 = vunpack.c.l.b16 %v3216
      %v3254 = vunpack.c.h.b16 %v3216
      %v3255 = vunpack.c.l.b16 %v3217
      %v3256 = vunpack.c.h.b16 %v3217
      %v3257 = vunpack.c.l.b16 %v3218
      %v3258 = vunpack.c.h.b16 %v3218
      %v3259 = vunpack.c.l.b16 %v3219
      %v3260 = vunpack.c.h.b16 %v3219
      %v3261 = vunpack.c.l.b16 %v3220
      %v3262 = vunpack.c.h.b16 %v3220
      %v3263 = vunpack.c.l.b16 %v3221
      %v3264 = vunpack.c.h.b16 %v3221
      %v3265 = vunpack.c.l.b16 %v3222
      %v3266 = vunpack.c.h.b16 %v3222
      %v3267 = vunpack.c.l.b16 %v3223
      %v3268 = vunpack.c.h.b16 %v3223
      %v3269 = vunpack.c.l.b16 %v3224
      %v3270 = vunpack.c.h.b16 %v3224
      %v3271 = vunpack.c.l.b16 %v3225
      %v3272 = vunpack.c.h.b16 %v3225
      %v3273 = vunpack.c.l.b16 %v3226
      %v3274 = vunpack.c.h.b16 %v3226
      %v3275 = vpack.c.b16 %v3243, %v3243
      %v3276 = vpack.c.b16 %v3244, %v3244
      %v3277 = vpack.c.b16 %v3245, %v3245
      %v3278 = vpack.c.b16 %v3246, %v3246
      %v3279 = vpack.c.b16 %v3247, %v3247
      %v3280 = vpack.c.b16 %v3248, %v3248
      %v3281 = vpack.c.b16 %v3249, %v3249
      %v3282 = vpack.c.b16 %v3250, %v3250
      %v3283 = vpack.c.b16 %v3251, %v3251
      %v3284 = vpack.c.b16 %v3252, %v3252
      %v3285 = vpack.c.b16 %v3253, %v3253
      %v3286 = vpack.c.b16 %v3254, %v3254
      %v3287 = vpack.c.b16 %v3255, %v3255
      %v3288 = vpack.c.b16 %v3256, %v3256
      %v3289 = vpack.c.b16 %v3257, %v3257
      %v3290 = vpack.c.b16 %v3258, %v3258
      %v3291 = vpack.c.b16 %v3259, %v3259
      %v3292 = vpack.c.b16 %v3260, %v3260
      %v3293 = vpack.c.b16 %v3261, %v3261
      %v3294 = vpack.c.b16 %v3262, %v3262
      %v3295 = vpack.c.b16 %v3263, %v3263
      %v3296 = vpack.c.b16 %v3264, %v3264
      %v3297 = vpack.c.b16 %v3265, %v3265
      %v3298 = vpack.c.b16 %v3266, %v3266
      %v3299 = vpack.c.b16 %v3267, %v3267
      %v3300 = vpack.c.b16 %v3268, %v3268
      %v3301 = vpack.c.b16 %v3269, %v3269
      %v3302 = vpack.c.b16 %v3270, %v3270
      %v3303 = vpack.c.b16 %v3271, %v3271
      %v3304 = vpack.c.b16 %v3272, %v3272
      %v3305 = vpack.c.b16 %v3273, %v3273
      %v3306 = vpack.c.b16 %v3274, %v3274
      %3339 = vst [vmem:[%s187] sm:$0xf] %v3275
      %3340 = vst [vmem:[%s187 + $0x4] sm:$0xf] %v3276
      %3341 = vst [vmem:[%s187 + $0x8] sm:$0xf] %v3277
      %3342 = vst [vmem:[%s187 + $0xc] sm:$0xf] %v3278
      %3343 = vst [vmem:[%s187 + $0x10] sm:$0xf] %v3279
      %3344 = vst [vmem:[%s187 + $0x14] sm:$0xf] %v3280
      %3345 = vst [vmem:[%s187 + $0x18] sm:$0xf] %v3281
      %3346 = vst [vmem:[%s187 + $0x1c] sm:$0xf] %v3282
      %3347 = vst [vmem:[%s187 + $0x20] sm:$0xf] %v3283
      %3348 = vst [vmem:[%s187 + $0x24] sm:$0xf] %v3284
      %3349 = vst [vmem:[%s187 + $0x28] sm:$0xf] %v3285
      %3350 = vst [vmem:[%s187 + $0x2c] sm:$0xf] %v3286
      %3351 = vst [vmem:[%s187 + $0x30] sm:$0xf] %v3287
      %3352 = vst [vmem:[%s187 + $0x34] sm:$0xf] %v3288
      %3353 = vst [vmem:[%s187 + $0x38] sm:$0xf] %v3289
      %3354 = vst [vmem:[%s187 + $0x3c] sm:$0xf] %v3290
      %3355 = vst [vmem:[%s187 + $0x40] sm:$0xf] %v3291
      %3356 = vst [vmem:[%s187 + $0x44] sm:$0xf] %v3292
      %3357 = vst [vmem:[%s187 + $0x48] sm:$0xf] %v3293
      %3358 = vst [vmem:[%s187 + $0x4c] sm:$0xf] %v3294
      %3359 = vst [vmem:[%s187 + $0x50] sm:$0xf] %v3295
      %3360 = vst [vmem:[%s187 + $0x54] sm:$0xf] %v3296
      %3361 = vst [vmem:[%s187 + $0x58] sm:$0xf] %v3297
      %3362 = vst [vmem:[%s187 + $0x5c] sm:$0xf] %v3298
      %3363 = vst [vmem:[%s187 + $0x60] sm:$0xf] %v3299
      %3364 = vst [vmem:[%s187 + $0x64] sm:$0xf] %v3300
      %3365 = vst [vmem:[%s187 + $0x68] sm:$0xf] %v3301
      %3366 = vst [vmem:[%s187 + $0x6c] sm:$0xf] %v3302
      %3367 = vst [vmem:[%s187 + $0x70] sm:$0xf] %v3303
      %3368 = vst [vmem:[%s187 + $0x74] sm:$0xf] %v3304
      %3369 = vst [vmem:[%s187 + $0x78] sm:$0xf] %v3305
      %3370 = vst [vmem:[%s187 + $0x7c] sm:$0xf] %v3306
      %s3371 = smul.u32 16, %s18
      %p3372 = scmp.lt.s32.totalorder %s17, 1
      %s3373 = scalar_select %p3372, %s17, 1
      %p3374 = scmp.lt.s32.totalorder %s3371, 15
      %s3375 = scalar_select %p3374, %s3371, 15
      %s3376 = smul.addr %s3375, 2
      %s3377 = smul.addr %s3373, 32
      %s3378 = sadd.s32 %s3376, %s3377
      %s3379 = smul.addr %s3378, 4
      %s3380 = scalar_lea.vmem %s2, %s3379
      // Predicated region
      $region29: #{odconv2d_forward.1} parent=27 // pred_check
        %p3381 = pneg %p97
      $region30: #{odconv2d_forward.1} parent=27 // pred_check_branch
        %3383 = sbr.rel (%p3381) target = $region32
      $region31: #{odconv2d_forward.1} parent=27 // pred_region
        %s3384 = smul.u32 16, %s18
      $region32: #{odconv2d_forward.1} parent=27 // pred_fallthru
        _
    $region28: #{odconv2d_forward.1} parent=5 // pred_fallthru
      _
    %p3385 = scmp.le.s32.totalorder 2, %s8
    // Predicated region
    $region33: #{odconv2d_forward.1} parent=5 // pred_check
      %p3386 = pneg %p3385
    $region34: #{odconv2d_forward.1} parent=5 // pred_check_branch
      %3388 = sbr.rel (%p3386) target = $region36
    $region35: #{odconv2d_forward.1} parent=5 // pred_region
      %s3389 = ssub.s32 %s8, 2
      // Predicated region
      $region37: #{odconv2d_forward.1} parent=35 // pred_check
        %p3390 = pneg %p103
      $region38: #{odconv2d_forward.1} parent=35 // pred_check_branch
        %3392 = sbr.rel (%p3390) target = $region40
      $region39: #{odconv2d_forward.1} parent=35 // pred_region
        %s3393 = smul.u32 16, %s20
        %p3394 = scmp.lt.s32.totalorder %s19, 1
        %s3395 = scalar_select %p3394, %s19, 1
        %p3396 = scmp.lt.s32.totalorder %s3393, 15
        %s3397 = scalar_select %p3396, %s3393, 15
        %s3398 = smul.addr %s3397, 2
        %s3399 = smul.addr %s3395, 32
        %s3400 = sadd.s32 %s3398, %s3399
        %s3401 = smul.addr %s3400, 4
        %s3402 = scalar_lea.vmem %s2, %s3401
      $region40: #{odconv2d_forward.1} parent=35 // pred_fallthru
        _
    $region36: #{odconv2d_forward.1} parent=5 // pred_fallthru
      _
  $region6: #{odconv2d_forward.1} parent=0 // loop_footer
    %s12 = sadd.s32 1, %s8
  $region7: #{odconv2d_forward.1} parent=0 // loop_footer_branch
    %7 = sbr.rel target = $region3
  $region8: #{odconv2d_forward.1} parent=0 // loop_exit
    _

</llo_original>
